<compile_context>
chip_gen: v5e
topology: v5e:2x2
jax: 0.10.0
libtpu: 0.0.40
codegen_flags: <defaults>
</compile_context>

<pallas_src>
import jax
import jax.numpy as jnp
from jax.experimental import pallas as pl
from jax.experimental.pallas import tpu as pltpu  # noqa: F401  (tiny kernel; default VMEM limits suffice)
import numpy as np


def _full_spec(shape):
    """Whole-array block for a grid-less pallas_call."""
    n = len(shape)
    return pl.BlockSpec(shape, lambda: (0,) * n)


# ----------------------------------------------------------------------------
# Fused kernel: L LSTM layers over the full sequence + fc head, one launch.
# Refs (in order):
#   x2d (T*B, Din)          time-major flattened input
#   w_rec (L*H, L*4H)       block-diagonal recurrent weights (gate order i,f,o,g)
#   w_misc                  packed [w_ih_1..w_ih_{L-1} ; w_ih_0 ; b_0 .. b_{L-1}]
#   w_fc_b (H+1, O)         packed [w_fc^T ; b_fc]
#   hc0 (2L, B, H)          stacked [h0 ; c0]
#   out (B, O), hcn (2L, B, H)   outputs
# ----------------------------------------------------------------------------
def _make_fused_lstm_kernel(num_layers, seq_len, batch, hidden_size):
    L, T, B, H = num_layers, seq_len, batch, hidden_size
    G = 4 * H

    def kernel(x_ref, wrec_ref, wmisc_ref, wfc_ref, hc0_ref, out_ref, hcn_ref):
        Din = x_ref.shape[1]

        # ---- unpack packed weights / biases ONCE, outside the recurrence ----
        off = 0
        w_x = [None] * L
        for l in range(1, L):                       # layer>=1 input-from-below weights
            w_x[l] = wmisc_ref[off:off + H, :]      # (H, 4H)
            off += H
        w_x0 = wmisc_ref[off:off + Din, :]          # (Din, 4H)
        off += Din
        b0 = wmisc_ref[off:off + 1, :]              # (1, 4H) layer-0 bias
        # hoisted broadcasts: one (B, 4H) value per layer>=1, reused every step
        bias_b = [jnp.broadcast_to(wmisc_ref[off + l:off + l + 1, :], (B, G))
                  for l in range(1, L)]

        w_rec = wrec_ref[...]                       # (L*H, L*4H) block-diagonal

        # ---- hoisted layer-0 input projection over the whole sequence ----
        # one (T*B, Din) @ (Din, 4H) MXU matmul + single bias broadcast
        gx0 = jnp.dot(x_ref[...], w_x0, preferred_element_type=jnp.float32) + b0

        # ---- initial states (values; kept in vregs/VMEM by the compiler) ----
        h = [hc0_ref[l] for l in range(L)]          # each (B, H)
        c = [hc0_ref[L + l] for l in range(L)]

        def cell(gates, c_prev):
            # gate column order [i, f, o, g]; sigmoid == 0.5*(tanh(0.5x)+1)
            # -> one EUP pass for all three sigmoid gates, one tanh for g.
            sig = 0.5 * (jnp.tanh(0.5 * gates[:, :3 * H]) + 1.0)
            i_g = sig[:, 0 * H:1 * H]
            f_g = sig[:, 1 * H:2 * H]
            o_g = sig[:, 2 * H:3 * H]
            g_g = jnp.tanh(gates[:, 3 * H:])
            c_new = f_g * c_prev + i_g * g_g
            h_new = o_g * jnp.tanh(c_new)
            return h_new, c_new

        # ---- time recurrence, fully unrolled (T is small & static) ----
        for t in range(T):
            # ALL layers' recurrent (t-1 state) contributions in ONE matmul.
            h_cat = jnp.concatenate(h, axis=-1)                              # (B, L*H)
            rec = jnp.dot(h_cat, w_rec, preferred_element_type=jnp.float32)  # (B, L*4H)
            # layer 0: hoisted input projection slice is a contiguous row block
            g0 = gx0[t * B:(t + 1) * B, :] + rec[:, :G]
            h[0], c[0] = cell(g0, c[0])
            # layers 1..L-1: only this matmul is data-dependent within the step
            for l in range(1, L):
                gl = (jnp.dot(h[l - 1], w_x[l], preferred_element_type=jnp.float32)
                      + rec[:, l * G:(l + 1) * G] + bias_b[l - 1])
                h[l], c[l] = cell(gl, c[l])

        # ---- fc head on the top layer's last hidden state (== out[:, -1, :]) ----
        wfc = wfc_ref[0:H, :]                       # (H, O)
        bfc = wfc_ref[H:H + 1, :]                   # (1, O)
        out_ref[...] = jnp.dot(h[L - 1], wfc, preferred_element_type=jnp.float32) + bfc

        # final states, written exactly once
        for l in range(L):
            hcn_ref[l] = h[l]
            hcn_ref[L + l] = c[l]

    return kernel


# ----------------------------------------------------------------------------
# Forward wrapper (jitted): one pallas_call, everything resident in VMEM.
# ----------------------------------------------------------------------------
def _lstm_fused_forward(prepared, x, h0, c0):
    B, T, Din = x.shape
    L, _, H = h0.shape
    O = prepared["w_fc_b"].shape[1]

    # time-major, flattened: row t*B + b  ==  x[b, t, :]   (cheap XLA op, tiny)
    x2d = jnp.transpose(x, (1, 0, 2)).reshape(T * B, Din)
    hc0 = jnp.concatenate([h0, c0], axis=0)        # (2L, B, H), one DMA

    kernel = _make_fused_lstm_kernel(L, T, B, H)

    out, hcn = pl.pallas_call(
        kernel,
        out_shape=(jax.ShapeDtypeStruct((B, O), jnp.float32),
                   jax.ShapeDtypeStruct((2 * L, B, H), jnp.float32)),
        in_specs=[_full_spec((T * B, Din)),
                  _full_spec(prepared["w_rec"].shape),
                  _full_spec(prepared["w_misc"].shape),
                  _full_spec(prepared["w_fc_b"].shape),
                  _full_spec((2 * L, B, H))],
        out_specs=(_full_spec((B, O)),
                   _full_spec((2 * L, B, H))),
    )(x2d, prepared["w_rec"], prepared["w_misc"], prepared["w_fc_b"], hc0)

    return out, (hcn[:L], hcn[L:])


lstm_module_forward = jax.jit(_lstm_fused_forward)


# ----------------------------------------------------------------------------
# One-time parameter preparation (outside jit):
#   * permute gate rows [i,f,g,o] -> [i,f,o,g], transpose to lane-contiguous
#   * fuse b_ih + b_hh
#   * build the block-diagonal recurrent weight
#   * pack everything into 3 weight blobs (fewer DMAs)
# ----------------------------------------------------------------------------
def prepare_params(params):
    L = len(params["w_ih"])
    H = params["w_hh"][0].shape[1]
    O = params["w_fc"].shape[0]
    G = 4 * H
    # PyTorch gate order [i, f, g, o]  ->  kernel order [i, f, o, g]
    perm = np.concatenate([np.arange(0, 2 * H), np.arange(3 * H, 4 * H),
                           np.arange(2 * H, 3 * H)])

    w_ih_p = [jnp.asarray(params["w_ih"][l])[perm, :].T for l in range(L)]   # (Din_l, 4H)
    w_hh_p = [jnp.asarray(params["w_hh"][l])[perm, :].T for l in range(L)]   # (H, 4H)
    b_p = [(jnp.asarray(params["b_ih"][l]) + jnp.asarray(params["b_hh"][l]))[perm]
           .reshape(1, G) for l in range(L)]

    # block-diagonal recurrent weight: (L*H, L*4H)
    w_rec = jnp.zeros((L * H, L * G), jnp.float32)
    for l in range(L):
        w_rec = w_rec.at[l * H:(l + 1) * H, l * G:(l + 1) * G].set(w_hh_p[l])

    # packed misc blob: [w_ih_1 .. w_ih_{L-1} ; w_ih_0 ; b_0 .. b_{L-1}]
    w_misc = jnp.concatenate([w_ih_p[l] for l in range(1, L)] + [w_ih_p[0]] + b_p,
                             axis=0)

    # packed fc blob: [w_fc^T ; b_fc]  -> (H+1, O)
    w_fc_b = jnp.concatenate([jnp.asarray(params["w_fc"]).T,
                              jnp.asarray(params["b_fc"]).reshape(1, O)], axis=0)

    return {"w_rec": w_rec, "w_misc": w_misc, "w_fc_b": w_fc_b}


# ----------------------------------------------------------------------------
# Pure-JAX reference (correctness check only), on raw PyTorch-layout params.
# ----------------------------------------------------------------------------
def lstm_module_reference(params, x, h0, c0):
    B, T, _ = x.shape
    H = h0.shape[-1]
    inp = x
    hs, cs = [], []
    for layer in range(len(params["w_ih"])):
        wih, whh = params["w_ih"][layer], params["w_hh"][layer]
        b = params["b_ih"][layer] + params["b_hh"][layer]
        h = h0[layer]
        c = c0[layer]
        ys = []
        for t in range(T):
            g = inp[:, t, :] @ wih.T + h @ whh.T + b
            i = jax.nn.sigmoid(g[:, 0 * H:1 * H])
            f = jax.nn.sigmoid(g[:, 1 * H:2 * H])
            gg = jnp.tanh(g[:, 2 * H:3 * H])
            o = jax.nn.sigmoid(g[:, 3 * H:4 * H])
            c = f * c + i * gg
            h = o * jnp.tanh(c)
            ys.append(h)
        inp = jnp.stack(ys, axis=1)
        hs.append(h)
        cs.append(c)
    out = inp[:, -1, :] @ params["w_fc"].T + params["b_fc"]
    return out, (jnp.stack(hs), jnp.stack(cs))


# ----------------------------------------------------------------------------
# Deterministic parameter init (PyTorch-style uniform(-1/sqrt(H), 1/sqrt(H)))
# ----------------------------------------------------------------------------
def init_params(key, input_size, hidden_size, num_layers, output_size):
    k = 1.0 / np.sqrt(hidden_size)
    params = {"w_ih": [], "w_hh": [], "b_ih": [], "b_hh": []}
    for layer in range(num_layers):
        din = input_size if layer == 0 else hidden_size
        key, k1, k2, k3, k4 = jax.random.split(key, 5)
        params["w_ih"].append(
            jax.random.uniform(k1, (4 * hidden_size, din), jnp.float32, -k, k))
        params["w_hh"].append(
            jax.random.uniform(k2, (4 * hidden_size, hidden_size), jnp.float32, -k, k))
        params["b_ih"].append(
            jax.random.uniform(k3, (4 * hidden_size,), jnp.float32, -k, k))
        params["b_hh"].append(
            jax.random.uniform(k4, (4 * hidden_size,), jnp.float32, -k, k))
    key, k5, k6 = jax.random.split(key, 3)
    params["w_fc"] = jax.random.uniform(
        k5, (output_size, hidden_size), jnp.float32, -k, k)
    params["b_fc"] = jax.random.uniform(k6, (output_size,), jnp.float32, -k, k)
    return params


if __name__ == "__main__":
    B, T = 2, 8                        # batch, sequence length
    input_size, hidden_size, num_layers, output_size = 4, 32, 2, 4

    key = jax.random.PRNGKey(0)
    key, pkey, xkey = jax.random.split(key, 3)
    params = init_params(pkey, input_size, hidden_size, num_layers, output_size)
    prepared = prepare_params(params)   # one-time packing, outside the jitted forward

    x = jax.random.normal(xkey, (B, T, input_size), jnp.float32)
    # h0/c0 default to zeros, exactly as in the PyTorch forward.
    h0 = jnp.zeros((num_layers, B, hidden_size), jnp.float32)
    c0 = jnp.zeros((num_layers, B, hidden_size), jnp.float32)

    out, (hn, cn) = lstm_module_forward(prepared, x, h0, c0)
    out = jax.block_until_ready(out)
    hn = jax.block_until_ready(hn)
    cn = jax.block_until_ready(cn)

    # sanity-check against a pure-JAX reference of the same math
    out_r, (hn_r, cn_r) = lstm_module_reference(params, x, h0, c0)
    np.testing.assert_allclose(np.asarray(out), np.asarray(out_r), rtol=1e-4, atol=1e-4)
    np.testing.assert_allclose(np.asarray(hn), np.asarray(hn_r), rtol=1e-4, atol=1e-4)
    np.testing.assert_allclose(np.asarray(cn), np.asarray(cn_r), rtol=1e-4, atol=1e-4)

    assert out.shape == (B, output_size)
    assert hn.shape == (num_layers, B, hidden_size)
    assert cn.shape == (num_layers, B, hidden_size)

    print("KERNEL_OK")
</pallas_src>

<mosaic_0001>
module attributes {stable_mosaic.version = 11 : i64} {
  func.func @kernel(%arg0: memref<16x4xf32, #tpu.memory_space<vmem>>, %arg1: memref<64x256xf32, #tpu.memory_space<vmem>>, %arg2: memref<38x128xf32, #tpu.memory_space<vmem>>, %arg3: memref<33x4xf32, #tpu.memory_space<vmem>>, %arg4: memref<4x2x32xf32, #tpu.memory_space<vmem>>, %arg5: memref<2x4xf32, #tpu.memory_space<vmem>>, %arg6: memref<4x2x32xf32, #tpu.memory_space<vmem>>) attributes {dimension_semantics = [], scalar_prefetch = 0 : i64, scratch_operands = 0 : i64, tpu.core_type = #tpu.core_type<tc>} {
    %c0 = arith.constant 0 : index
    %c0_0 = arith.constant 0 : index
    %0 = vector.load %arg2[%c0, %c0_0] : memref<38x128xf32, #tpu.memory_space<vmem>>, vector<32x128xf32>
    %c32 = arith.constant 32 : index
    %c0_1 = arith.constant 0 : index
    %1 = vector.load %arg2[%c32, %c0_1] : memref<38x128xf32, #tpu.memory_space<vmem>>, vector<4x128xf32>
    %c36 = arith.constant 36 : index
    %c0_2 = arith.constant 0 : index
    %2 = vector.load %arg2[%c36, %c0_2] : memref<38x128xf32, #tpu.memory_space<vmem>>, vector<1x128xf32>
    %c37 = arith.constant 37 : index
    %c0_3 = arith.constant 0 : index
    %3 = vector.load %arg2[%c37, %c0_3] : memref<38x128xf32, #tpu.memory_space<vmem>>, vector<1x128xf32>
    %4 = vector.shape_cast %3 : vector<1x128xf32> to vector<1x128xf32>
    %5 = vector.broadcast %4 : vector<1x128xf32> to vector<2x128xf32>
    %c0_4 = arith.constant 0 : index
    %c0_5 = arith.constant 0 : index
    %6 = vector.load %arg1[%c0_4, %c0_5] : memref<64x256xf32, #tpu.memory_space<vmem>>, vector<64x256xf32>
    %c0_6 = arith.constant 0 : index
    %c0_7 = arith.constant 0 : index
    %7 = vector.load %arg0[%c0_6, %c0_7] : memref<16x4xf32, #tpu.memory_space<vmem>>, vector<16x4xf32>
    %cst = arith.constant dense<0.000000e+00> : vector<16x128xf32>
    %8 = tpu.matmul %7, %1, %cst {dimension_numbers = #tpu.dot_dimension_numbers<[1], [0], [0], [1], [0, 0, 1, 1], [], []>} : vector<16x4xf32>, vector<4x128xf32>, vector<16x128xf32> -> vector<16x128xf32>
    %9 = vector.broadcast %2 : vector<1x128xf32> to vector<16x128xf32>
    %10 = arith.addf %8, %9 : vector<16x128xf32>
    %c0_8 = arith.constant 0 : index
    %c0_9 = arith.constant 0 : index
    %c0_10 = arith.constant 0 : index
    %11 = vector.load %arg4[%c0_8, %c0_9, %c0_10] : memref<4x2x32xf32, #tpu.memory_space<vmem>>, vector<1x2x32xf32>
    %12 = vector.shape_cast %11 : vector<1x2x32xf32> to vector<2x32xf32>
    %c1 = arith.constant 1 : index
    %c0_11 = arith.constant 0 : index
    %c0_12 = arith.constant 0 : index
    %13 = vector.load %arg4[%c1, %c0_11, %c0_12] : memref<4x2x32xf32, #tpu.memory_space<vmem>>, vector<1x2x32xf32>
    %14 = vector.shape_cast %13 : vector<1x2x32xf32> to vector<2x32xf32>
    %c2 = arith.constant 2 : index
    %c0_13 = arith.constant 0 : index
    %c0_14 = arith.constant 0 : index
    %15 = vector.load %arg4[%c2, %c0_13, %c0_14] : memref<4x2x32xf32, #tpu.memory_space<vmem>>, vector<1x2x32xf32>
    %16 = vector.shape_cast %15 : vector<1x2x32xf32> to vector<2x32xf32>
    %c3 = arith.constant 3 : index
    %c0_15 = arith.constant 0 : index
    %c0_16 = arith.constant 0 : index
    %17 = vector.load %arg4[%c3, %c0_15, %c0_16] : memref<4x2x32xf32, #tpu.memory_space<vmem>>, vector<1x2x32xf32>
    %18 = vector.shape_cast %17 : vector<1x2x32xf32> to vector<2x32xf32>
    %19 = tpu.concatenate %12, %14 in 1 : vector<2x32xf32>, vector<2x32xf32> -> vector<2x64xf32>
    %cst_17 = arith.constant dense<0.000000e+00> : vector<2x256xf32>
    %20 = tpu.matmul %19, %6, %cst_17 {dimension_numbers = #tpu.dot_dimension_numbers<[1], [0], [0], [1], [0, 0, 1, 1], [], []>} : vector<2x64xf32>, vector<64x256xf32>, vector<2x256xf32> -> vector<2x256xf32>
    %21 = vector.extract_strided_slice %10 {offsets = [0, 0], sizes = [2, 128], strides = [1, 1]} : vector<16x128xf32> to vector<2x128xf32>
    %22 = vector.extract_strided_slice %20 {offsets = [0, 0], sizes = [2, 128], strides = [1, 1]} : vector<2x256xf32> to vector<2x128xf32>
    %23 = arith.addf %21, %22 : vector<2x128xf32>
    %24 = vector.extract_strided_slice %23 {offsets = [0, 0], sizes = [2, 96], strides = [1, 1]} : vector<2x128xf32> to vector<2x96xf32>
    %cst_18 = arith.constant 5.000000e-01 : f32
    %25 = vector.broadcast %cst_18 : f32 to vector<2x96xf32>
    %26 = arith.mulf %25, %24 : vector<2x96xf32>
    %27 = math.tanh %26 : vector<2x96xf32>
    %cst_19 = arith.constant 1.000000e+00 : f32
    %28 = vector.broadcast %cst_19 : f32 to vector<2x96xf32>
    %29 = arith.addf %27, %28 : vector<2x96xf32>
    %cst_20 = arith.constant 5.000000e-01 : f32
    %30 = vector.broadcast %cst_20 : f32 to vector<2x96xf32>
    %31 = arith.mulf %30, %29 : vector<2x96xf32>
    %32 = vector.extract_strided_slice %31 {offsets = [0, 0], sizes = [2, 32], strides = [1, 1]} : vector<2x96xf32> to vector<2x32xf32>
    %33 = vector.extract_strided_slice %31 {offsets = [0, 32], sizes = [2, 32], strides = [1, 1]} : vector<2x96xf32> to vector<2x32xf32>
    %34 = vector.extract_strided_slice %31 {offsets = [0, 64], sizes = [2, 32], strides = [1, 1]} : vector<2x96xf32> to vector<2x32xf32>
    %35 = vector.extract_strided_slice %23 {offsets = [0, 96], sizes = [2, 32], strides = [1, 1]} : vector<2x128xf32> to vector<2x32xf32>
    %36 = math.tanh %35 : vector<2x32xf32>
    %37 = arith.mulf %33, %16 : vector<2x32xf32>
    %38 = arith.mulf %32, %36 : vector<2x32xf32>
    %39 = arith.addf %37, %38 : vector<2x32xf32>
    %40 = math.tanh %39 : vector<2x32xf32>
    %41 = arith.mulf %34, %40 : vector<2x32xf32>
    %cst_21 = arith.constant dense<0.000000e+00> : vector<2x128xf32>
    %42 = tpu.matmul %41, %0, %cst_21 {dimension_numbers = #tpu.dot_dimension_numbers<[1], [0], [0], [1], [0, 0, 1, 1], [], []>} : vector<2x32xf32>, vector<32x128xf32>, vector<2x128xf32> -> vector<2x128xf32>
    %43 = vector.extract_strided_slice %20 {offsets = [0, 128], sizes = [2, 128], strides = [1, 1]} : vector<2x256xf32> to vector<2x128xf32>
    %44 = arith.addf %42, %43 : vector<2x128xf32>
    %45 = arith.addf %44, %5 : vector<2x128xf32>
    %46 = vector.extract_strided_slice %45 {offsets = [0, 0], sizes = [2, 96], strides = [1, 1]} : vector<2x128xf32> to vector<2x96xf32>
    %cst_22 = arith.constant 5.000000e-01 : f32
    %47 = vector.broadcast %cst_22 : f32 to vector<2x96xf32>
    %48 = arith.mulf %47, %46 : vector<2x96xf32>
    %49 = math.tanh %48 : vector<2x96xf32>
    %cst_23 = arith.constant 1.000000e+00 : f32
    %50 = vector.broadcast %cst_23 : f32 to vector<2x96xf32>
    %51 = arith.addf %49, %50 : vector<2x96xf32>
    %cst_24 = arith.constant 5.000000e-01 : f32
    %52 = vector.broadcast %cst_24 : f32 to vector<2x96xf32>
    %53 = arith.mulf %52, %51 : vector<2x96xf32>
    %54 = vector.extract_strided_slice %53 {offsets = [0, 0], sizes = [2, 32], strides = [1, 1]} : vector<2x96xf32> to vector<2x32xf32>
    %55 = vector.extract_strided_slice %53 {offsets = [0, 32], sizes = [2, 32], strides = [1, 1]} : vector<2x96xf32> to vector<2x32xf32>
    %56 = vector.extract_strided_slice %53 {offsets = [0, 64], sizes = [2, 32], strides = [1, 1]} : vector<2x96xf32> to vector<2x32xf32>
    %57 = vector.extract_strided_slice %45 {offsets = [0, 96], sizes = [2, 32], strides = [1, 1]} : vector<2x128xf32> to vector<2x32xf32>
    %58 = math.tanh %57 : vector<2x32xf32>
    %59 = arith.mulf %55, %18 : vector<2x32xf32>
    %60 = arith.mulf %54, %58 : vector<2x32xf32>
    %61 = arith.addf %59, %60 : vector<2x32xf32>
    %62 = math.tanh %61 : vector<2x32xf32>
    %63 = arith.mulf %56, %62 : vector<2x32xf32>
    %64 = tpu.concatenate %41, %63 in 1 : vector<2x32xf32>, vector<2x32xf32> -> vector<2x64xf32>
    %cst_25 = arith.constant dense<0.000000e+00> : vector<2x256xf32>
    %65 = tpu.matmul %64, %6, %cst_25 {dimension_numbers = #tpu.dot_dimension_numbers<[1], [0], [0], [1], [0, 0, 1, 1], [], []>} : vector<2x64xf32>, vector<64x256xf32>, vector<2x256xf32> -> vector<2x256xf32>
    %66 = vector.extract_strided_slice %10 {offsets = [2, 0], sizes = [2, 128], strides = [1, 1]} : vector<16x128xf32> to vector<2x128xf32>
    %67 = vector.extract_strided_slice %65 {offsets = [0, 0], sizes = [2, 128], strides = [1, 1]} : vector<2x256xf32> to vector<2x128xf32>
    %68 = arith.addf %66, %67 : vector<2x128xf32>
    %69 = vector.extract_strided_slice %68 {offsets = [0, 0], sizes = [2, 96], strides = [1, 1]} : vector<2x128xf32> to vector<2x96xf32>
    %cst_26 = arith.constant 5.000000e-01 : f32
    %70 = vector.broadcast %cst_26 : f32 to vector<2x96xf32>
    %71 = arith.mulf %70, %69 : vector<2x96xf32>
    %72 = math.tanh %71 : vector<2x96xf32>
    %cst_27 = arith.constant 1.000000e+00 : f32
    %73 = vector.broadcast %cst_27 : f32 to vector<2x96xf32>
    %74 = arith.addf %72, %73 : vector<2x96xf32>
    %cst_28 = arith.constant 5.000000e-01 : f32
    %75 = vector.broadcast %cst_28 : f32 to vector<2x96xf32>
    %76 = arith.mulf %75, %74 : vector<2x96xf32>
    %77 = vector.extract_strided_slice %76 {offsets = [0, 0], sizes = [2, 32], strides = [1, 1]} : vector<2x96xf32> to vector<2x32xf32>
    %78 = vector.extract_strided_slice %76 {offsets = [0, 32], sizes = [2, 32], strides = [1, 1]} : vector<2x96xf32> to vector<2x32xf32>
    %79 = vector.extract_strided_slice %76 {offsets = [0, 64], sizes = [2, 32], strides = [1, 1]} : vector<2x96xf32> to vector<2x32xf32>
    %80 = vector.extract_strided_slice %68 {offsets = [0, 96], sizes = [2, 32], strides = [1, 1]} : vector<2x128xf32> to vector<2x32xf32>
    %81 = math.tanh %80 : vector<2x32xf32>
    %82 = arith.mulf %78, %39 : vector<2x32xf32>
    %83 = arith.mulf %77, %81 : vector<2x32xf32>
    %84 = arith.addf %82, %83 : vector<2x32xf32>
    %85 = math.tanh %84 : vector<2x32xf32>
    %86 = arith.mulf %79, %85 : vector<2x32xf32>
    %cst_29 = arith.constant dense<0.000000e+00> : vector<2x128xf32>
    %87 = tpu.matmul %86, %0, %cst_29 {dimension_numbers = #tpu.dot_dimension_numbers<[1], [0], [0], [1], [0, 0, 1, 1], [], []>} : vector<2x32xf32>, vector<32x128xf32>, vector<2x128xf32> -> vector<2x128xf32>
    %88 = vector.extract_strided_slice %65 {offsets = [0, 128], sizes = [2, 128], strides = [1, 1]} : vector<2x256xf32> to vector<2x128xf32>
    %89 = arith.addf %87, %88 : vector<2x128xf32>
    %90 = arith.addf %89, %5 : vector<2x128xf32>
    %91 = vector.extract_strided_slice %90 {offsets = [0, 0], sizes = [2, 96], strides = [1, 1]} : vector<2x128xf32> to vector<2x96xf32>
    %cst_30 = arith.constant 5.000000e-01 : f32
    %92 = vector.broadcast %cst_30 : f32 to vector<2x96xf32>
    %93 = arith.mulf %92, %91 : vector<2x96xf32>
    %94 = math.tanh %93 : vector<2x96xf32>
    %cst_31 = arith.constant 1.000000e+00 : f32
    %95 = vector.broadcast %cst_31 : f32 to vector<2x96xf32>
    %96 = arith.addf %94, %95 : vector<2x96xf32>
    %cst_32 = arith.constant 5.000000e-01 : f32
    %97 = vector.broadcast %cst_32 : f32 to vector<2x96xf32>
    %98 = arith.mulf %97, %96 : vector<2x96xf32>
    %99 = vector.extract_strided_slice %98 {offsets = [0, 0], sizes = [2, 32], strides = [1, 1]} : vector<2x96xf32> to vector<2x32xf32>
    %100 = vector.extract_strided_slice %98 {offsets = [0, 32], sizes = [2, 32], strides = [1, 1]} : vector<2x96xf32> to vector<2x32xf32>
    %101 = vector.extract_strided_slice %98 {offsets = [0, 64], sizes = [2, 32], strides = [1, 1]} : vector<2x96xf32> to vector<2x32xf32>
    %102 = vector.extract_strided_slice %90 {offsets = [0, 96], sizes = [2, 32], strides = [1, 1]} : vector<2x128xf32> to vector<2x32xf32>
    %103 = math.tanh %102 : vector<2x32xf32>
    %104 = arith.mulf %100, %61 : vector<2x32xf32>
    %105 = arith.mulf %99, %103 : vector<2x32xf32>
    %106 = arith.addf %104, %105 : vector<2x32xf32>
    %107 = math.tanh %106 : vector<2x32xf32>
    %108 = arith.mulf %101, %107 : vector<2x32xf32>
    %109 = tpu.concatenate %86, %108 in 1 : vector<2x32xf32>, vector<2x32xf32> -> vector<2x64xf32>
    %cst_33 = arith.constant dense<0.000000e+00> : vector<2x256xf32>
    %110 = tpu.matmul %109, %6, %cst_33 {dimension_numbers = #tpu.dot_dimension_numbers<[1], [0], [0], [1], [0, 0, 1, 1], [], []>} : vector<2x64xf32>, vector<64x256xf32>, vector<2x256xf32> -> vector<2x256xf32>
    %111 = vector.extract_strided_slice %10 {offsets = [4, 0], sizes = [2, 128], strides = [1, 1]} : vector<16x128xf32> to vector<2x128xf32>
    %112 = vector.extract_strided_slice %110 {offsets = [0, 0], sizes = [2, 128], strides = [1, 1]} : vector<2x256xf32> to vector<2x128xf32>
    %113 = arith.addf %111, %112 : vector<2x128xf32>
    %114 = vector.extract_strided_slice %113 {offsets = [0, 0], sizes = [2, 96], strides = [1, 1]} : vector<2x128xf32> to vector<2x96xf32>
    %cst_34 = arith.constant 5.000000e-01 : f32
    %115 = vector.broadcast %cst_34 : f32 to vector<2x96xf32>
    %116 = arith.mulf %115, %114 : vector<2x96xf32>
    %117 = math.tanh %116 : vector<2x96xf32>
    %cst_35 = arith.constant 1.000000e+00 : f32
    %118 = vector.broadcast %cst_35 : f32 to vector<2x96xf32>
    %119 = arith.addf %117, %118 : vector<2x96xf32>
    %cst_36 = arith.constant 5.000000e-01 : f32
    %120 = vector.broadcast %cst_36 : f32 to vector<2x96xf32>
    %121 = arith.mulf %120, %119 : vector<2x96xf32>
    %122 = vector.extract_strided_slice %121 {offsets = [0, 0], sizes = [2, 32], strides = [1, 1]} : vector<2x96xf32> to vector<2x32xf32>
    %123 = vector.extract_strided_slice %121 {offsets = [0, 32], sizes = [2, 32], strides = [1, 1]} : vector<2x96xf32> to vector<2x32xf32>
    %124 = vector.extract_strided_slice %121 {offsets = [0, 64], sizes = [2, 32], strides = [1, 1]} : vector<2x96xf32> to vector<2x32xf32>
    %125 = vector.extract_strided_slice %113 {offsets = [0, 96], sizes = [2, 32], strides = [1, 1]} : vector<2x128xf32> to vector<2x32xf32>
    %126 = math.tanh %125 : vector<2x32xf32>
    %127 = arith.mulf %123, %84 : vector<2x32xf32>
    %128 = arith.mulf %122, %126 : vector<2x32xf32>
    %129 = arith.addf %127, %128 : vector<2x32xf32>
    %130 = math.tanh %129 : vector<2x32xf32>
    %131 = arith.mulf %124, %130 : vector<2x32xf32>
    %cst_37 = arith.constant dense<0.000000e+00> : vector<2x128xf32>
    %132 = tpu.matmul %131, %0, %cst_37 {dimension_numbers = #tpu.dot_dimension_numbers<[1], [0], [0], [1], [0, 0, 1, 1], [], []>} : vector<2x32xf32>, vector<32x128xf32>, vector<2x128xf32> -> vector<2x128xf32>
    %133 = vector.extract_strided_slice %110 {offsets = [0, 128], sizes = [2, 128], strides = [1, 1]} : vector<2x256xf32> to vector<2x128xf32>
    %134 = arith.addf %132, %133 : vector<2x128xf32>
    %135 = arith.addf %134, %5 : vector<2x128xf32>
    %136 = vector.extract_strided_slice %135 {offsets = [0, 0], sizes = [2, 96], strides = [1, 1]} : vector<2x128xf32> to vector<2x96xf32>
    %cst_38 = arith.constant 5.000000e-01 : f32
    %137 = vector.broadcast %cst_38 : f32 to vector<2x96xf32>
    %138 = arith.mulf %137, %136 : vector<2x96xf32>
    %139 = math.tanh %138 : vector<2x96xf32>
    %cst_39 = arith.constant 1.000000e+00 : f32
    %140 = vector.broadcast %cst_39 : f32 to vector<2x96xf32>
    %141 = arith.addf %139, %140 : vector<2x96xf32>
    %cst_40 = arith.constant 5.000000e-01 : f32
    %142 = vector.broadcast %cst_40 : f32 to vector<2x96xf32>
    %143 = arith.mulf %142, %141 : vector<2x96xf32>
    %144 = vector.extract_strided_slice %143 {offsets = [0, 0], sizes = [2, 32], strides = [1, 1]} : vector<2x96xf32> to vector<2x32xf32>
    %145 = vector.extract_strided_slice %143 {offsets = [0, 32], sizes = [2, 32], strides = [1, 1]} : vector<2x96xf32> to vector<2x32xf32>
    %146 = vector.extract_strided_slice %143 {offsets = [0, 64], sizes = [2, 32], strides = [1, 1]} : vector<2x96xf32> to vector<2x32xf32>
    %147 = vector.extract_strided_slice %135 {offsets = [0, 96], sizes = [2, 32], strides = [1, 1]} : vector<2x128xf32> to vector<2x32xf32>
    %148 = math.tanh %147 : vector<2x32xf32>
    %149 = arith.mulf %145, %106 : vector<2x32xf32>
    %150 = arith.mulf %144, %148 : vector<2x32xf32>
    %151 = arith.addf %149, %150 : vector<2x32xf32>
    %152 = math.tanh %151 : vector<2x32xf32>
    %153 = arith.mulf %146, %152 : vector<2x32xf32>
    %154 = tpu.concatenate %131, %153 in 1 : vector<2x32xf32>, vector<2x32xf32> -> vector<2x64xf32>
    %cst_41 = arith.constant dense<0.000000e+00> : vector<2x256xf32>
    %155 = tpu.matmul %154, %6, %cst_41 {dimension_numbers = #tpu.dot_dimension_numbers<[1], [0], [0], [1], [0, 0, 1, 1], [], []>} : vector<2x64xf32>, vector<64x256xf32>, vector<2x256xf32> -> vector<2x256xf32>
    %156 = vector.extract_strided_slice %10 {offsets = [6, 0], sizes = [2, 128], strides = [1, 1]} : vector<16x128xf32> to vector<2x128xf32>
    %157 = vector.extract_strided_slice %155 {offsets = [0, 0], sizes = [2, 128], strides = [1, 1]} : vector<2x256xf32> to vector<2x128xf32>
    %158 = arith.addf %156, %157 : vector<2x128xf32>
    %159 = vector.extract_strided_slice %158 {offsets = [0, 0], sizes = [2, 96], strides = [1, 1]} : vector<2x128xf32> to vector<2x96xf32>
    %cst_42 = arith.constant 5.000000e-01 : f32
    %160 = vector.broadcast %cst_42 : f32 to vector<2x96xf32>
    %161 = arith.mulf %160, %159 : vector<2x96xf32>
    %162 = math.tanh %161 : vector<2x96xf32>
    %cst_43 = arith.constant 1.000000e+00 : f32
    %163 = vector.broadcast %cst_43 : f32 to vector<2x96xf32>
    %164 = arith.addf %162, %163 : vector<2x96xf32>
    %cst_44 = arith.constant 5.000000e-01 : f32
    %165 = vector.broadcast %cst_44 : f32 to vector<2x96xf32>
    %166 = arith.mulf %165, %164 : vector<2x96xf32>
    %167 = vector.extract_strided_slice %166 {offsets = [0, 0], sizes = [2, 32], strides = [1, 1]} : vector<2x96xf32> to vector<2x32xf32>
    %168 = vector.extract_strided_slice %166 {offsets = [0, 32], sizes = [2, 32], strides = [1, 1]} : vector<2x96xf32> to vector<2x32xf32>
    %169 = vector.extract_strided_slice %166 {offsets = [0, 64], sizes = [2, 32], strides = [1, 1]} : vector<2x96xf32> to vector<2x32xf32>
    %170 = vector.extract_strided_slice %158 {offsets = [0, 96], sizes = [2, 32], strides = [1, 1]} : vector<2x128xf32> to vector<2x32xf32>
    %171 = math.tanh %170 : vector<2x32xf32>
    %172 = arith.mulf %168, %129 : vector<2x32xf32>
    %173 = arith.mulf %167, %171 : vector<2x32xf32>
    %174 = arith.addf %172, %173 : vector<2x32xf32>
    %175 = math.tanh %174 : vector<2x32xf32>
    %176 = arith.mulf %169, %175 : vector<2x32xf32>
    %cst_45 = arith.constant dense<0.000000e+00> : vector<2x128xf32>
    %177 = tpu.matmul %176, %0, %cst_45 {dimension_numbers = #tpu.dot_dimension_numbers<[1], [0], [0], [1], [0, 0, 1, 1], [], []>} : vector<2x32xf32>, vector<32x128xf32>, vector<2x128xf32> -> vector<2x128xf32>
    %178 = vector.extract_strided_slice %155 {offsets = [0, 128], sizes = [2, 128], strides = [1, 1]} : vector<2x256xf32> to vector<2x128xf32>
    %179 = arith.addf %177, %178 : vector<2x128xf32>
    %180 = arith.addf %179, %5 : vector<2x128xf32>
    %181 = vector.extract_strided_slice %180 {offsets = [0, 0], sizes = [2, 96], strides = [1, 1]} : vector<2x128xf32> to vector<2x96xf32>
    %cst_46 = arith.constant 5.000000e-01 : f32
    %182 = vector.broadcast %cst_46 : f32 to vector<2x96xf32>
    %183 = arith.mulf %182, %181 : vector<2x96xf32>
    %184 = math.tanh %183 : vector<2x96xf32>
    %cst_47 = arith.constant 1.000000e+00 : f32
    %185 = vector.broadcast %cst_47 : f32 to vector<2x96xf32>
    %186 = arith.addf %184, %185 : vector<2x96xf32>
    %cst_48 = arith.constant 5.000000e-01 : f32
    %187 = vector.broadcast %cst_48 : f32 to vector<2x96xf32>
    %188 = arith.mulf %187, %186 : vector<2x96xf32>
    %189 = vector.extract_strided_slice %188 {offsets = [0, 0], sizes = [2, 32], strides = [1, 1]} : vector<2x96xf32> to vector<2x32xf32>
    %190 = vector.extract_strided_slice %188 {offsets = [0, 32], sizes = [2, 32], strides = [1, 1]} : vector<2x96xf32> to vector<2x32xf32>
    %191 = vector.extract_strided_slice %188 {offsets = [0, 64], sizes = [2, 32], strides = [1, 1]} : vector<2x96xf32> to vector<2x32xf32>
    %192 = vector.extract_strided_slice %180 {offsets = [0, 96], sizes = [2, 32], strides = [1, 1]} : vector<2x128xf32> to vector<2x32xf32>
    %193 = math.tanh %192 : vector<2x32xf32>
    %194 = arith.mulf %190, %151 : vector<2x32xf32>
    %195 = arith.mulf %189, %193 : vector<2x32xf32>
    %196 = arith.addf %194, %195 : vector<2x32xf32>
    %197 = math.tanh %196 : vector<2x32xf32>
    %198 = arith.mulf %191, %197 : vector<2x32xf32>
    %199 = tpu.concatenate %176, %198 in 1 : vector<2x32xf32>, vector<2x32xf32> -> vector<2x64xf32>
    %cst_49 = arith.constant dense<0.000000e+00> : vector<2x256xf32>
    %200 = tpu.matmul %199, %6, %cst_49 {dimension_numbers = #tpu.dot_dimension_numbers<[1], [0], [0], [1], [0, 0, 1, 1], [], []>} : vector<2x64xf32>, vector<64x256xf32>, vector<2x256xf32> -> vector<2x256xf32>
    %201 = vector.extract_strided_slice %10 {offsets = [8, 0], sizes = [2, 128], strides = [1, 1]} : vector<16x128xf32> to vector<2x128xf32>
    %202 = vector.extract_strided_slice %200 {offsets = [0, 0], sizes = [2, 128], strides = [1, 1]} : vector<2x256xf32> to vector<2x128xf32>
    %203 = arith.addf %201, %202 : vector<2x128xf32>
    %204 = vector.extract_strided_slice %203 {offsets = [0, 0], sizes = [2, 96], strides = [1, 1]} : vector<2x128xf32> to vector<2x96xf32>
    %cst_50 = arith.constant 5.000000e-01 : f32
    %205 = vector.broadcast %cst_50 : f32 to vector<2x96xf32>
    %206 = arith.mulf %205, %204 : vector<2x96xf32>
    %207 = math.tanh %206 : vector<2x96xf32>
    %cst_51 = arith.constant 1.000000e+00 : f32
    %208 = vector.broadcast %cst_51 : f32 to vector<2x96xf32>
    %209 = arith.addf %207, %208 : vector<2x96xf32>
    %cst_52 = arith.constant 5.000000e-01 : f32
    %210 = vector.broadcast %cst_52 : f32 to vector<2x96xf32>
    %211 = arith.mulf %210, %209 : vector<2x96xf32>
    %212 = vector.extract_strided_slice %211 {offsets = [0, 0], sizes = [2, 32], strides = [1, 1]} : vector<2x96xf32> to vector<2x32xf32>
    %213 = vector.extract_strided_slice %211 {offsets = [0, 32], sizes = [2, 32], strides = [1, 1]} : vector<2x96xf32> to vector<2x32xf32>
    %214 = vector.extract_strided_slice %211 {offsets = [0, 64], sizes = [2, 32], strides = [1, 1]} : vector<2x96xf32> to vector<2x32xf32>
    %215 = vector.extract_strided_slice %203 {offsets = [0, 96], sizes = [2, 32], strides = [1, 1]} : vector<2x128xf32> to vector<2x32xf32>
    %216 = math.tanh %215 : vector<2x32xf32>
    %217 = arith.mulf %213, %174 : vector<2x32xf32>
    %218 = arith.mulf %212, %216 : vector<2x32xf32>
    %219 = arith.addf %217, %218 : vector<2x32xf32>
    %220 = math.tanh %219 : vector<2x32xf32>
    %221 = arith.mulf %214, %220 : vector<2x32xf32>
    %cst_53 = arith.constant dense<0.000000e+00> : vector<2x128xf32>
    %222 = tpu.matmul %221, %0, %cst_53 {dimension_numbers = #tpu.dot_dimension_numbers<[1], [0], [0], [1], [0, 0, 1, 1], [], []>} : vector<2x32xf32>, vector<32x128xf32>, vector<2x128xf32> -> vector<2x128xf32>
    %223 = vector.extract_strided_slice %200 {offsets = [0, 128], sizes = [2, 128], strides = [1, 1]} : vector<2x256xf32> to vector<2x128xf32>
    %224 = arith.addf %222, %223 : vector<2x128xf32>
    %225 = arith.addf %224, %5 : vector<2x128xf32>
    %226 = vector.extract_strided_slice %225 {offsets = [0, 0], sizes = [2, 96], strides = [1, 1]} : vector<2x128xf32> to vector<2x96xf32>
    %cst_54 = arith.constant 5.000000e-01 : f32
    %227 = vector.broadcast %cst_54 : f32 to vector<2x96xf32>
    %228 = arith.mulf %227, %226 : vector<2x96xf32>
    %229 = math.tanh %228 : vector<2x96xf32>
    %cst_55 = arith.constant 1.000000e+00 : f32
    %230 = vector.broadcast %cst_55 : f32 to vector<2x96xf32>
    %231 = arith.addf %229, %230 : vector<2x96xf32>
    %cst_56 = arith.constant 5.000000e-01 : f32
    %232 = vector.broadcast %cst_56 : f32 to vector<2x96xf32>
    %233 = arith.mulf %232, %231 : vector<2x96xf32>
    %234 = vector.extract_strided_slice %233 {offsets = [0, 0], sizes = [2, 32], strides = [1, 1]} : vector<2x96xf32> to vector<2x32xf32>
    %235 = vector.extract_strided_slice %233 {offsets = [0, 32], sizes = [2, 32], strides = [1, 1]} : vector<2x96xf32> to vector<2x32xf32>
    %236 = vector.extract_strided_slice %233 {offsets = [0, 64], sizes = [2, 32], strides = [1, 1]} : vector<2x96xf32> to vector<2x32xf32>
    %237 = vector.extract_strided_slice %225 {offsets = [0, 96], sizes = [2, 32], strides = [1, 1]} : vector<2x128xf32> to vector<2x32xf32>
    %238 = math.tanh %237 : vector<2x32xf32>
    %239 = arith.mulf %235, %196 : vector<2x32xf32>
    %240 = arith.mulf %234, %238 : vector<2x32xf32>
    %241 = arith.addf %239, %240 : vector<2x32xf32>
    %242 = math.tanh %241 : vector<2x32xf32>
    %243 = arith.mulf %236, %242 : vector<2x32xf32>
    %244 = tpu.concatenate %221, %243 in 1 : vector<2x32xf32>, vector<2x32xf32> -> vector<2x64xf32>
    %cst_57 = arith.constant dense<0.000000e+00> : vector<2x256xf32>
    %245 = tpu.matmul %244, %6, %cst_57 {dimension_numbers = #tpu.dot_dimension_numbers<[1], [0], [0], [1], [0, 0, 1, 1], [], []>} : vector<2x64xf32>, vector<64x256xf32>, vector<2x256xf32> -> vector<2x256xf32>
    %246 = vector.extract_strided_slice %10 {offsets = [10, 0], sizes = [2, 128], strides = [1, 1]} : vector<16x128xf32> to vector<2x128xf32>
    %247 = vector.extract_strided_slice %245 {offsets = [0, 0], sizes = [2, 128], strides = [1, 1]} : vector<2x256xf32> to vector<2x128xf32>
    %248 = arith.addf %246, %247 : vector<2x128xf32>
    %249 = vector.extract_strided_slice %248 {offsets = [0, 0], sizes = [2, 96], strides = [1, 1]} : vector<2x128xf32> to vector<2x96xf32>
    %cst_58 = arith.constant 5.000000e-01 : f32
    %250 = vector.broadcast %cst_58 : f32 to vector<2x96xf32>
    %251 = arith.mulf %250, %249 : vector<2x96xf32>
    %252 = math.tanh %251 : vector<2x96xf32>
    %cst_59 = arith.constant 1.000000e+00 : f32
    %253 = vector.broadcast %cst_59 : f32 to vector<2x96xf32>
    %254 = arith.addf %252, %253 : vector<2x96xf32>
    %cst_60 = arith.constant 5.000000e-01 : f32
    %255 = vector.broadcast %cst_60 : f32 to vector<2x96xf32>
    %256 = arith.mulf %255, %254 : vector<2x96xf32>
    %257 = vector.extract_strided_slice %256 {offsets = [0, 0], sizes = [2, 32], strides = [1, 1]} : vector<2x96xf32> to vector<2x32xf32>
    %258 = vector.extract_strided_slice %256 {offsets = [0, 32], sizes = [2, 32], strides = [1, 1]} : vector<2x96xf32> to vector<2x32xf32>
    %259 = vector.extract_strided_slice %256 {offsets = [0, 64], sizes = [2, 32], strides = [1, 1]} : vector<2x96xf32> to vector<2x32xf32>
    %260 = vector.extract_strided_slice %248 {offsets = [0, 96], sizes = [2, 32], strides = [1, 1]} : vector<2x128xf32> to vector<2x32xf32>
    %261 = math.tanh %260 : vector<2x32xf32>
    %262 = arith.mulf %258, %219 : vector<2x32xf32>
    %263 = arith.mulf %257, %261 : vector<2x32xf32>
    %264 = arith.addf %262, %263 : vector<2x32xf32>
    %265 = math.tanh %264 : vector<2x32xf32>
    %266 = arith.mulf %259, %265 : vector<2x32xf32>
    %cst_61 = arith.constant dense<0.000000e+00> : vector<2x128xf32>
    %267 = tpu.matmul %266, %0, %cst_61 {dimension_numbers = #tpu.dot_dimension_numbers<[1], [0], [0], [1], [0, 0, 1, 1], [], []>} : vector<2x32xf32>, vector<32x128xf32>, vector<2x128xf32> -> vector<2x128xf32>
    %268 = vector.extract_strided_slice %245 {offsets = [0, 128], sizes = [2, 128], strides = [1, 1]} : vector<2x256xf32> to vector<2x128xf32>
    %269 = arith.addf %267, %268 : vector<2x128xf32>
    %270 = arith.addf %269, %5 : vector<2x128xf32>
    %271 = vector.extract_strided_slice %270 {offsets = [0, 0], sizes = [2, 96], strides = [1, 1]} : vector<2x128xf32> to vector<2x96xf32>
    %cst_62 = arith.constant 5.000000e-01 : f32
    %272 = vector.broadcast %cst_62 : f32 to vector<2x96xf32>
    %273 = arith.mulf %272, %271 : vector<2x96xf32>
    %274 = math.tanh %273 : vector<2x96xf32>
    %cst_63 = arith.constant 1.000000e+00 : f32
    %275 = vector.broadcast %cst_63 : f32 to vector<2x96xf32>
    %276 = arith.addf %274, %275 : vector<2x96xf32>
    %cst_64 = arith.constant 5.000000e-01 : f32
    %277 = vector.broadcast %cst_64 : f32 to vector<2x96xf32>
    %278 = arith.mulf %277, %276 : vector<2x96xf32>
    %279 = vector.extract_strided_slice %278 {offsets = [0, 0], sizes = [2, 32], strides = [1, 1]} : vector<2x96xf32> to vector<2x32xf32>
    %280 = vector.extract_strided_slice %278 {offsets = [0, 32], sizes = [2, 32], strides = [1, 1]} : vector<2x96xf32> to vector<2x32xf32>
    %281 = vector.extract_strided_slice %278 {offsets = [0, 64], sizes = [2, 32], strides = [1, 1]} : vector<2x96xf32> to vector<2x32xf32>
    %282 = vector.extract_strided_slice %270 {offsets = [0, 96], sizes = [2, 32], strides = [1, 1]} : vector<2x128xf32> to vector<2x32xf32>
    %283 = math.tanh %282 : vector<2x32xf32>
    %284 = arith.mulf %280, %241 : vector<2x32xf32>
    %285 = arith.mulf %279, %283 : vector<2x32xf32>
    %286 = arith.addf %284, %285 : vector<2x32xf32>
    %287 = math.tanh %286 : vector<2x32xf32>
    %288 = arith.mulf %281, %287 : vector<2x32xf32>
    %289 = tpu.concatenate %266, %288 in 1 : vector<2x32xf32>, vector<2x32xf32> -> vector<2x64xf32>
    %cst_65 = arith.constant dense<0.000000e+00> : vector<2x256xf32>
    %290 = tpu.matmul %289, %6, %cst_65 {dimension_numbers = #tpu.dot_dimension_numbers<[1], [0], [0], [1], [0, 0, 1, 1], [], []>} : vector<2x64xf32>, vector<64x256xf32>, vector<2x256xf32> -> vector<2x256xf32>
    %291 = vector.extract_strided_slice %10 {offsets = [12, 0], sizes = [2, 128], strides = [1, 1]} : vector<16x128xf32> to vector<2x128xf32>
    %292 = vector.extract_strided_slice %290 {offsets = [0, 0], sizes = [2, 128], strides = [1, 1]} : vector<2x256xf32> to vector<2x128xf32>
    %293 = arith.addf %291, %292 : vector<2x128xf32>
    %294 = vector.extract_strided_slice %293 {offsets = [0, 0], sizes = [2, 96], strides = [1, 1]} : vector<2x128xf32> to vector<2x96xf32>
    %cst_66 = arith.constant 5.000000e-01 : f32
    %295 = vector.broadcast %cst_66 : f32 to vector<2x96xf32>
    %296 = arith.mulf %295, %294 : vector<2x96xf32>
    %297 = math.tanh %296 : vector<2x96xf32>
    %cst_67 = arith.constant 1.000000e+00 : f32
    %298 = vector.broadcast %cst_67 : f32 to vector<2x96xf32>
    %299 = arith.addf %297, %298 : vector<2x96xf32>
    %cst_68 = arith.constant 5.000000e-01 : f32
    %300 = vector.broadcast %cst_68 : f32 to vector<2x96xf32>
    %301 = arith.mulf %300, %299 : vector<2x96xf32>
    %302 = vector.extract_strided_slice %301 {offsets = [0, 0], sizes = [2, 32], strides = [1, 1]} : vector<2x96xf32> to vector<2x32xf32>
    %303 = vector.extract_strided_slice %301 {offsets = [0, 32], sizes = [2, 32], strides = [1, 1]} : vector<2x96xf32> to vector<2x32xf32>
    %304 = vector.extract_strided_slice %301 {offsets = [0, 64], sizes = [2, 32], strides = [1, 1]} : vector<2x96xf32> to vector<2x32xf32>
    %305 = vector.extract_strided_slice %293 {offsets = [0, 96], sizes = [2, 32], strides = [1, 1]} : vector<2x128xf32> to vector<2x32xf32>
    %306 = math.tanh %305 : vector<2x32xf32>
    %307 = arith.mulf %303, %264 : vector<2x32xf32>
    %308 = arith.mulf %302, %306 : vector<2x32xf32>
    %309 = arith.addf %307, %308 : vector<2x32xf32>
    %310 = math.tanh %309 : vector<2x32xf32>
    %311 = arith.mulf %304, %310 : vector<2x32xf32>
    %cst_69 = arith.constant dense<0.000000e+00> : vector<2x128xf32>
    %312 = tpu.matmul %311, %0, %cst_69 {dimension_numbers = #tpu.dot_dimension_numbers<[1], [0], [0], [1], [0, 0, 1, 1], [], []>} : vector<2x32xf32>, vector<32x128xf32>, vector<2x128xf32> -> vector<2x128xf32>
    %313 = vector.extract_strided_slice %290 {offsets = [0, 128], sizes = [2, 128], strides = [1, 1]} : vector<2x256xf32> to vector<2x128xf32>
    %314 = arith.addf %312, %313 : vector<2x128xf32>
    %315 = arith.addf %314, %5 : vector<2x128xf32>
    %316 = vector.extract_strided_slice %315 {offsets = [0, 0], sizes = [2, 96], strides = [1, 1]} : vector<2x128xf32> to vector<2x96xf32>
    %cst_70 = arith.constant 5.000000e-01 : f32
    %317 = vector.broadcast %cst_70 : f32 to vector<2x96xf32>
    %318 = arith.mulf %317, %316 : vector<2x96xf32>
    %319 = math.tanh %318 : vector<2x96xf32>
    %cst_71 = arith.constant 1.000000e+00 : f32
    %320 = vector.broadcast %cst_71 : f32 to vector<2x96xf32>
    %321 = arith.addf %319, %320 : vector<2x96xf32>
    %cst_72 = arith.constant 5.000000e-01 : f32
    %322 = vector.broadcast %cst_72 : f32 to vector<2x96xf32>
    %323 = arith.mulf %322, %321 : vector<2x96xf32>
    %324 = vector.extract_strided_slice %323 {offsets = [0, 0], sizes = [2, 32], strides = [1, 1]} : vector<2x96xf32> to vector<2x32xf32>
    %325 = vector.extract_strided_slice %323 {offsets = [0, 32], sizes = [2, 32], strides = [1, 1]} : vector<2x96xf32> to vector<2x32xf32>
    %326 = vector.extract_strided_slice %323 {offsets = [0, 64], sizes = [2, 32], strides = [1, 1]} : vector<2x96xf32> to vector<2x32xf32>
    %327 = vector.extract_strided_slice %315 {offsets = [0, 96], sizes = [2, 32], strides = [1, 1]} : vector<2x128xf32> to vector<2x32xf32>
    %328 = math.tanh %327 : vector<2x32xf32>
    %329 = arith.mulf %325, %286 : vector<2x32xf32>
    %330 = arith.mulf %324, %328 : vector<2x32xf32>
    %331 = arith.addf %329, %330 : vector<2x32xf32>
    %332 = math.tanh %331 : vector<2x32xf32>
    %333 = arith.mulf %326, %332 : vector<2x32xf32>
    %334 = tpu.concatenate %311, %333 in 1 : vector<2x32xf32>, vector<2x32xf32> -> vector<2x64xf32>
    %cst_73 = arith.constant dense<0.000000e+00> : vector<2x256xf32>
    %335 = tpu.matmul %334, %6, %cst_73 {dimension_numbers = #tpu.dot_dimension_numbers<[1], [0], [0], [1], [0, 0, 1, 1], [], []>} : vector<2x64xf32>, vector<64x256xf32>, vector<2x256xf32> -> vector<2x256xf32>
    %336 = vector.extract_strided_slice %10 {offsets = [14, 0], sizes = [2, 128], strides = [1, 1]} : vector<16x128xf32> to vector<2x128xf32>
    %337 = vector.extract_strided_slice %335 {offsets = [0, 0], sizes = [2, 128], strides = [1, 1]} : vector<2x256xf32> to vector<2x128xf32>
    %338 = arith.addf %336, %337 : vector<2x128xf32>
    %339 = vector.extract_strided_slice %338 {offsets = [0, 0], sizes = [2, 96], strides = [1, 1]} : vector<2x128xf32> to vector<2x96xf32>
    %cst_74 = arith.constant 5.000000e-01 : f32
    %340 = vector.broadcast %cst_74 : f32 to vector<2x96xf32>
    %341 = arith.mulf %340, %339 : vector<2x96xf32>
    %342 = math.tanh %341 : vector<2x96xf32>
    %cst_75 = arith.constant 1.000000e+00 : f32
    %343 = vector.broadcast %cst_75 : f32 to vector<2x96xf32>
    %344 = arith.addf %342, %343 : vector<2x96xf32>
    %cst_76 = arith.constant 5.000000e-01 : f32
    %345 = vector.broadcast %cst_76 : f32 to vector<2x96xf32>
    %346 = arith.mulf %345, %344 : vector<2x96xf32>
    %347 = vector.extract_strided_slice %346 {offsets = [0, 0], sizes = [2, 32], strides = [1, 1]} : vector<2x96xf32> to vector<2x32xf32>
    %348 = vector.extract_strided_slice %346 {offsets = [0, 32], sizes = [2, 32], strides = [1, 1]} : vector<2x96xf32> to vector<2x32xf32>
    %349 = vector.extract_strided_slice %346 {offsets = [0, 64], sizes = [2, 32], strides = [1, 1]} : vector<2x96xf32> to vector<2x32xf32>
    %350 = vector.extract_strided_slice %338 {offsets = [0, 96], sizes = [2, 32], strides = [1, 1]} : vector<2x128xf32> to vector<2x32xf32>
    %351 = math.tanh %350 : vector<2x32xf32>
    %352 = arith.mulf %348, %309 : vector<2x32xf32>
    %353 = arith.mulf %347, %351 : vector<2x32xf32>
    %354 = arith.addf %352, %353 : vector<2x32xf32>
    %355 = math.tanh %354 : vector<2x32xf32>
    %356 = arith.mulf %349, %355 : vector<2x32xf32>
    %cst_77 = arith.constant dense<0.000000e+00> : vector<2x128xf32>
    %357 = tpu.matmul %356, %0, %cst_77 {dimension_numbers = #tpu.dot_dimension_numbers<[1], [0], [0], [1], [0, 0, 1, 1], [], []>} : vector<2x32xf32>, vector<32x128xf32>, vector<2x128xf32> -> vector<2x128xf32>
    %358 = vector.extract_strided_slice %335 {offsets = [0, 128], sizes = [2, 128], strides = [1, 1]} : vector<2x256xf32> to vector<2x128xf32>
    %359 = arith.addf %357, %358 : vector<2x128xf32>
    %360 = arith.addf %359, %5 : vector<2x128xf32>
    %361 = vector.extract_strided_slice %360 {offsets = [0, 0], sizes = [2, 96], strides = [1, 1]} : vector<2x128xf32> to vector<2x96xf32>
    %cst_78 = arith.constant 5.000000e-01 : f32
    %362 = vector.broadcast %cst_78 : f32 to vector<2x96xf32>
    %363 = arith.mulf %362, %361 : vector<2x96xf32>
    %364 = math.tanh %363 : vector<2x96xf32>
    %cst_79 = arith.constant 1.000000e+00 : f32
    %365 = vector.broadcast %cst_79 : f32 to vector<2x96xf32>
    %366 = arith.addf %364, %365 : vector<2x96xf32>
    %cst_80 = arith.constant 5.000000e-01 : f32
    %367 = vector.broadcast %cst_80 : f32 to vector<2x96xf32>
    %368 = arith.mulf %367, %366 : vector<2x96xf32>
    %369 = vector.extract_strided_slice %368 {offsets = [0, 0], sizes = [2, 32], strides = [1, 1]} : vector<2x96xf32> to vector<2x32xf32>
    %370 = vector.extract_strided_slice %368 {offsets = [0, 32], sizes = [2, 32], strides = [1, 1]} : vector<2x96xf32> to vector<2x32xf32>
    %371 = vector.extract_strided_slice %368 {offsets = [0, 64], sizes = [2, 32], strides = [1, 1]} : vector<2x96xf32> to vector<2x32xf32>
    %372 = vector.extract_strided_slice %360 {offsets = [0, 96], sizes = [2, 32], strides = [1, 1]} : vector<2x128xf32> to vector<2x32xf32>
    %373 = math.tanh %372 : vector<2x32xf32>
    %374 = arith.mulf %370, %331 : vector<2x32xf32>
    %375 = arith.mulf %369, %373 : vector<2x32xf32>
    %376 = arith.addf %374, %375 : vector<2x32xf32>
    %377 = math.tanh %376 : vector<2x32xf32>
    %378 = arith.mulf %371, %377 : vector<2x32xf32>
    %c0_81 = arith.constant 0 : index
    %c0_82 = arith.constant 0 : index
    %379 = vector.load %arg3[%c0_81, %c0_82] : memref<33x4xf32, #tpu.memory_space<vmem>>, vector<32x4xf32>
    %c32_83 = arith.constant 32 : index
    %c0_84 = arith.constant 0 : index
    %380 = vector.load %arg3[%c32_83, %c0_84] : memref<33x4xf32, #tpu.memory_space<vmem>>, vector<1x4xf32>
    %cst_85 = arith.constant dense<0.000000e+00> : vector<2x4xf32>
    %381 = tpu.matmul %378, %379, %cst_85 {dimension_numbers = #tpu.dot_dimension_numbers<[1], [0], [0], [1], [0, 0, 1, 1], [], []>} : vector<2x32xf32>, vector<32x4xf32>, vector<2x4xf32> -> vector<2x4xf32>
    %382 = vector.broadcast %380 : vector<1x4xf32> to vector<2x4xf32>
    %383 = arith.addf %381, %382 : vector<2x4xf32>
    %c0_86 = arith.constant 0 : index
    %c0_87 = arith.constant 0 : index
    %384 = vector.load %arg5[%c0_86, %c0_87] : memref<2x4xf32, #tpu.memory_space<vmem>>, vector<2x4xf32>
    tpu.vector_store %arg5[%c0_86, %c0_87], %383 {strides = array<i32>} : memref<2x4xf32, #tpu.memory_space<vmem>>, vector<2x4xf32>,
    %c0_88 = arith.constant 0 : index
    %c0_89 = arith.constant 0 : index
    %c0_90 = arith.constant 0 : index
    %385 = vector.load %arg6[%c0_88, %c0_89, %c0_90] : memref<4x2x32xf32, #tpu.memory_space<vmem>>, vector<1x2x32xf32>
    %386 = vector.shape_cast %385 : vector<1x2x32xf32> to vector<2x32xf32>
    %387 = vector.shape_cast %356 : vector<2x32xf32> to vector<1x2x32xf32>
    tpu.vector_store %arg6[%c0_88, %c0_89, %c0_90], %387 {strides = array<i32>} : memref<4x2x32xf32, #tpu.memory_space<vmem>>, vector<1x2x32xf32>,
    %c2_91 = arith.constant 2 : index
    %c0_92 = arith.constant 0 : index
    %c0_93 = arith.constant 0 : index
    %388 = vector.load %arg6[%c2_91, %c0_92, %c0_93] : memref<4x2x32xf32, #tpu.memory_space<vmem>>, vector<1x2x32xf32>
    %389 = vector.shape_cast %388 : vector<1x2x32xf32> to vector<2x32xf32>
    %390 = vector.shape_cast %354 : vector<2x32xf32> to vector<1x2x32xf32>
    tpu.vector_store %arg6[%c2_91, %c0_92, %c0_93], %390 {strides = array<i32>} : memref<4x2x32xf32, #tpu.memory_space<vmem>>, vector<1x2x32xf32>,
    %c1_94 = arith.constant 1 : index
    %c0_95 = arith.constant 0 : index
    %c0_96 = arith.constant 0 : index
    %391 = vector.load %arg6[%c1_94, %c0_95, %c0_96] : memref<4x2x32xf32, #tpu.memory_space<vmem>>, vector<1x2x32xf32>
    %392 = vector.shape_cast %391 : vector<1x2x32xf32> to vector<2x32xf32>
    %393 = vector.shape_cast %378 : vector<2x32xf32> to vector<1x2x32xf32>
    tpu.vector_store %arg6[%c1_94, %c0_95, %c0_96], %393 {strides = array<i32>} : memref<4x2x32xf32, #tpu.memory_space<vmem>>, vector<1x2x32xf32>,
    %c3_97 = arith.constant 3 : index
    %c0_98 = arith.constant 0 : index
    %c0_99 = arith.constant 0 : index
    %394 = vector.load %arg6[%c3_97, %c0_98, %c0_99] : memref<4x2x32xf32, #tpu.memory_space<vmem>>, vector<1x2x32xf32>
    %395 = vector.shape_cast %394 : vector<1x2x32xf32> to vector<2x32xf32>
    %396 = vector.shape_cast %376 : vector<2x32xf32> to vector<1x2x32xf32>
    tpu.vector_store %arg6[%c3_97, %c0_98, %c0_99], %396 {strides = array<i32>} : memref<4x2x32xf32, #tpu.memory_space<vmem>>, vector<1x2x32xf32>,
    return
  }
}

</mosaic_0001>

<llo_original>
// kernel: _lstm_fused_forward.1
$region0: #{_lstm_fused_forward.1}
  #allocation0 [shape = 'u32[]', space=smem, size = 0x4, offset = 0x4, fixed_abs, tag = 'smem constant byte address 0x4 - core index']
  #allocation1 [shape = 'u32[72,128]{1,0:T(1,128)}', space=vmem, size = 0x9000, scoped, tag = 'internal scratch']
  %s0 = inlined_call_operand.vmem [shape: f32[16,4], index: 0, kind: input, shape index: {}]
  %s1 = inlined_call_operand.hbm [shape: f32[64,256], index: 1, kind: input, shape index: {}]
  %s2 = inlined_call_operand.vmem [shape: f32[38,128], index: 2, kind: input, shape index: {}]
  %s3 = inlined_call_operand.vmem [shape: f32[33,4], index: 3, kind: input, shape index: {}]
  %s4 = inlined_call_operand.vmem [shape: f32[4,2,32], index: 4, kind: input, shape index: {}]
  %s5 = inlined_call_operand.hbm [shape: f32[2,4], index: 5, kind: output, shape index: {0}]
  %s6 = inlined_call_operand.vmem [shape: f32[4,2,32], index: 6, kind: output, shape index: {1}]
  %7 = xla_tuple %s5, %s6
  %s8 = sld [smem:[#allocation0]]
  $region42: #{_lstm_fused_forward.1} parent=0
    _
  %s10 = ssub.s32 1, %s8
  %s11 = scalar_select 0, %s10, %s8
  $region1: #{_lstm_fused_forward.1} parent=0
    #allocation2 [shape = 'u8[65536]{0}', space=vmem, size = 0x10000, scoped, tag = 'input window, operand 1, single buffered']
    #allocation3 [shape = 's32[1]{0}', space=sflag, size = 0x4, scoped, tag = 'scoped memory for _lstm_fused_forward.1']
    #allocation4 [shape = 's32[1]{0}', space=sflag, size = 0x4, scoped, tag = 'scoped memory for _lstm_fused_forward.1']
    #allocation5 [shape = 'u8[1024]{0}', space=vmem, size = 0x400, scoped, tag = 'output window, operand 0, single buffered']
    %12 = vsyncpa [#allocation3], 0
    %13 = vsyncpa [#allocation4], 0
    // Predicated region
    $region2: #{_lstm_fused_forward.1} parent=1 // pred_check
      _
    $region3: #{_lstm_fused_forward.1} parent=1 // pred_check_branch
      %15 = sbr.rel (0) target = $region5
    $region4: #{_lstm_fused_forward.1} parent=1 // pred_region
      _
    $region5: #{_lstm_fused_forward.1} parent=1 // pred_fallthru
      _
    // Predicated region
    $region6: #{_lstm_fused_forward.1} parent=1 // pred_check
      _
    $region7: #{_lstm_fused_forward.1} parent=1 // pred_check_branch
      %17 = sbr.rel (0) target = $region9
    $region8: #{_lstm_fused_forward.1} parent=1 // pred_region
      %19 = vsyncadd [#allocation3], 0
      %s20 = sshll.u32 %s1, 4
      %s21 = int_to_ptr.hbm [resolvable:$true] %s20
      %s22 = sshll.u32 [#allocation2], 4
      %s23 = int_to_ptr.vmem [resolvable:$true] %s22
      %28 = dma.hbm_to_vmem [thread:$0]  %s21, 2048, %s23, [#allocation3], 256, 256, 16
    $region9: #{_lstm_fused_forward.1} parent=1 // pred_fallthru
      _
    // Predicated region
    $region10: #{_lstm_fused_forward.1} parent=1 // pred_check
      _
    $region11: #{_lstm_fused_forward.1} parent=1 // pred_check_branch
      %30 = sbr.rel (0) target = $region13
    $region12: #{_lstm_fused_forward.1} parent=1 // pred_region
      _
    $region13: #{_lstm_fused_forward.1} parent=1 // pred_fallthru
      _
    // Predicated region
    $region14: #{_lstm_fused_forward.1} parent=1 // pred_check
      _
    $region15: #{_lstm_fused_forward.1} parent=1 // pred_check_branch
      %32 = sbr.rel (0) target = $region17
    $region16: #{_lstm_fused_forward.1} parent=1 // pred_region
      _
    $region17: #{_lstm_fused_forward.1} parent=1 // pred_fallthru
      _
    // Predicated region
    $region18: #{_lstm_fused_forward.1} parent=1 // pred_check
      _
    $region19: #{_lstm_fused_forward.1} parent=1 // pred_check_branch
      %34 = sbr.rel (0) target = $region21
    $region20: #{_lstm_fused_forward.1} parent=1 // pred_region
      _
    $region21: #{_lstm_fused_forward.1} parent=1 // pred_fallthru
      _
    // Predicated region
    $region22: #{_lstm_fused_forward.1} parent=1 // pred_check
      _
    $region23: #{_lstm_fused_forward.1} parent=1 // pred_check_branch
      %36 = sbr.rel (0) target = $region25
    $region24: #{_lstm_fused_forward.1} parent=1 // pred_region
      %38 = dma.done [#allocation3], 2048
    $region25: #{_lstm_fused_forward.1} parent=1 // pred_fallthru
      _
    %v39 = vld [vmem:[%s2] sm:$0xff]
    %v40 = vld [vmem:[%s2 + $0x8] sm:$0xff]
    %v41 = vld [vmem:[%s2 + $0x10] sm:$0xff]
    %v42 = vld [vmem:[%s2 + $0x18] sm:$0xff]
    %v43 = vld [vmem:[%s2 + $0x20] sm:$0xf]
    %v44 = vld [vmem:[%s2 + $0x24] sm:$0x1]
    %v45 = vld [vmem:[%s2 + $0x25] sm:$0x1]
    %v46 = vperm.slane %v45, 0
    %v47 = vld [vmem:[#allocation2] sm:$0xff]
    %v48 = vld [vmem:[#allocation2 + $0x8] sm:$0xff]
    %v49 = vld [vmem:[#allocation2 + $0x10] sm:$0xff]
    %v50 = vld [vmem:[#allocation2 + $0x18] sm:$0xff]
    %v51 = vld [vmem:[#allocation2 + $0x20] sm:$0xff]
    %v52 = vld [vmem:[#allocation2 + $0x28] sm:$0xff]
    %v53 = vld [vmem:[#allocation2 + $0x30] sm:$0xff]
    %v54 = vld [vmem:[#allocation2 + $0x38] sm:$0xff]
    %v55 = vld [vmem:[#allocation2 + $0x40] sm:$0xff]
    %v56 = vld [vmem:[#allocation2 + $0x48] sm:$0xff]
    %v57 = vld [vmem:[#allocation2 + $0x50] sm:$0xff]
    %v58 = vld [vmem:[#allocation2 + $0x58] sm:$0xff]
    %v59 = vld [vmem:[#allocation2 + $0x60] sm:$0xff]
    %v60 = vld [vmem:[#allocation2 + $0x68] sm:$0xff]
    %v61 = vld [vmem:[#allocation2 + $0x70] sm:$0xff]
    %v62 = vld [vmem:[#allocation2 + $0x78] sm:$0xff]
    %v63 = vld [vmem:[%s0] sm:$0xff]
    %v64 = vld [vmem:[%s0 + $0x8] sm:$0xff]
    %v65 = vperm.slane %v44, 0
    %vm66 = vcmask 31744
    %v68 = vsel %vm66, %v63, 0
    %v71 = vsel %vm66, %v64, 0
    %vm73 = vcmask 1043456
    %v75 = vsel %vm73, %v43, 0
    %77 = vmatpush.msra.mxu0 0.0
    %78 = vmatpush.msra.mxu0 0.0
    %79 = vmatpush.msra.mxu0 0.0
    %80 = vmatpush.msra.mxu0 0.0
    %81 = vmatpush.msra.mxu0 0.0
    %82 = vmatpush.msra.mxu0 0.0
    %83 = vmatpush.msra.mxu0 0.0
    %84 = vmatpush.msra.mxu0 0.0
    %85 = vmatpush.msra.mxu0 0.0
    %86 = vmatpush.msra.mxu0 0.0
    %87 = vmatpush.msra.mxu0 0.0
    %88 = vmatpush.msra.mxu0 0.0
    %89 = vmatpush.msra.mxu0 0.0
    %90 = vmatpush.msra.mxu0 0.0
    %91 = vmatpush.msra.mxu0 0.0
    %92 = vmatpush.msra.mxu0 %v75
    %93 = vmatmul.f32.gmra.mxu0 %v68
    %v94 = vpop.f32.mrf.mxu0
    %v95 = vadd.f32 %v65, %v94
    %96 = vmatmul.f32.gmra.mxu0 %v71
    %v97 = vpop.f32.mrf.mxu0
    %v98 = vadd.f32 %v65, %v97
    %99 = vdwg.mxu0
    %v100 = vld [vmem:[%s4] sm:$0x3]
    %s101 = scalar_lea.vmem %s4, 2
    %v102 = vld [vmem:[%s101] sm:$0x3]
    %s103 = scalar_lea.vmem %s4, 4
    %v104 = vld [vmem:[%s103] sm:$0x3]
    %s105 = scalar_lea.vmem %s4, 6
    %v106 = vld [vmem:[%s105] sm:$0x3]
    %108 = vrot.lane.b32.xlu0 %v102, 32
    %v109 = vpop.permute.xlu0 %108
    %vm111 = vcmask 261120
    %v112 = vsel %vm111, %v100, %v109
    %vm113 = vcmask 523264
    %v115 = vsel %vm113, %v112, 0
    %117 = vmatpush.msra.mxu0 0.0
    %118 = vmatpush.msra.mxu0 0.0
    %119 = vmatpush.msra.mxu0 0.0
    %120 = vmatpush.msra.mxu0 0.0
    %121 = vmatpush.msra.mxu0 0.0
    %122 = vmatpush.msra.mxu0 0.0
    %123 = vmatpush.msra.mxu0 0.0
    %124 = vmatpush.msra.mxu0 0.0
    %125 = vmatpush.msra.mxu0 %v61
    %126 = vmatpush.msra.mxu0 %v59
    %127 = vmatpush.msra.mxu0 %v57
    %128 = vmatpush.msra.mxu0 %v55
    %129 = vmatpush.msra.mxu0 %v53
    %130 = vmatpush.msra.mxu0 %v51
    %131 = vmatpush.msra.mxu0 %v49
    %132 = vmatpush.msra.mxu0 %v47
    %133 = vmatmul.f32.gmra.mxu0 %v115
    %v134 = vpop.f32.mrf.mxu0
    %v135 = vadd.f32 0.0, %v134
    %136 = vdwg.mxu0
    %137 = vmatpush.msra.mxu0 0.0
    %138 = vmatpush.msra.mxu0 0.0
    %139 = vmatpush.msra.mxu0 0.0
    %140 = vmatpush.msra.mxu0 0.0
    %141 = vmatpush.msra.mxu0 0.0
    %142 = vmatpush.msra.mxu0 0.0
    %143 = vmatpush.msra.mxu0 0.0
    %144 = vmatpush.msra.mxu0 0.0
    %145 = vmatpush.msra.mxu0 %v62
    %146 = vmatpush.msra.mxu0 %v60
    %147 = vmatpush.msra.mxu0 %v58
    %148 = vmatpush.msra.mxu0 %v56
    %149 = vmatpush.msra.mxu0 %v54
    %150 = vmatpush.msra.mxu0 %v52
    %151 = vmatpush.msra.mxu0 %v50
    %152 = vmatpush.msra.mxu0 %v48
    %153 = vmatmul.f32.gmra.mxu0 %v115
    %v154 = vpop.f32.mrf.mxu0
    %v155 = vadd.f32 0.0, %v154
    %156 = vdwg.mxu0
    %v157 = vadd.f32 %v95, %v135
    %v158 = vmul.f32 %v157, 0.5
    %v159 = vtanh.pop %v158
    %v160 = vadd.f32 %v159, 1.0
    %v161 = vmul.f32 %v160, 0.5
    %v162 = vtanh.pop %v157
    %164 = vrot.lane.b32.xlu0 %v104, 32
    %v165 = vpop.permute.xlu0 %164
    %v167 = vmul.f32 %v161, %v165
    %169 = vrot.lane.b32.xlu0 %v162, 32
    %v170 = vpop.permute.xlu0 %169
    %v172 = vmul.f32 %v161, %v170
    %174 = vrot.lane.b32.xlu0 %v172, 32
    %v175 = vpop.permute.xlu0 %174
    %v177 = vadd.f32 %v167, %v175
    %v178 = vtanh.pop %v177
    %180 = vrot.lane.b32.xlu0 %v178, 32
    %v181 = vpop.permute.xlu0 %180
    %v183 = vmul.f32 %v161, %v181
    %185 = vrot.lane.b32.xlu0 %v183, 64
    %v186 = vpop.permute.xlu0 %185
    %v187 = vsel %vm111, %v186, 0
    %189 = vmatpush.msra.mxu0 0.0
    %190 = vmatpush.msra.mxu0 0.0
    %191 = vmatpush.msra.mxu0 0.0
    %192 = vmatpush.msra.mxu0 0.0
    %193 = vmatpush.msra.mxu0 0.0
    %194 = vmatpush.msra.mxu0 0.0
    %195 = vmatpush.msra.mxu0 0.0
    %196 = vmatpush.msra.mxu0 0.0
    %197 = vmatpush.msra.mxu0 0.0
    %198 = vmatpush.msra.mxu0 0.0
    %199 = vmatpush.msra.mxu0 0.0
    %200 = vmatpush.msra.mxu0 0.0
    %201 = vmatpush.msra.mxu0 %v42
    %202 = vmatpush.msra.mxu0 %v41
    %203 = vmatpush.msra.mxu0 %v40
    %204 = vmatpush.msra.mxu0 %v39
    %205 = vmatmul.f32.gmra.mxu0 %v187
    %v206 = vpop.f32.mrf.mxu0
    %v207 = vadd.f32 %v155, %v206
    %208 = vdwg.mxu0
    %v209 = vadd.f32 %v207, %v46
    %v210 = vmul.f32 %v209, 0.5
    %v211 = vtanh.pop %v210
    %v212 = vadd.f32 %v211, 1.0
    %v213 = vmul.f32 %v212, 0.5
    %v214 = vtanh.pop %v209
    %216 = vrot.lane.b32.xlu0 %v106, 32
    %v217 = vpop.permute.xlu0 %216
    %v219 = vmul.f32 %v213, %v217
    %221 = vrot.lane.b32.xlu0 %v214, 32
    %v222 = vpop.permute.xlu0 %221
    %v224 = vmul.f32 %v213, %v222
    %226 = vrot.lane.b32.xlu0 %v224, 32
    %v227 = vpop.permute.xlu0 %226
    %v229 = vadd.f32 %v219, %v227
    %v230 = vtanh.pop %v229
    %232 = vrot.lane.b32.xlu0 %v230, 32
    %v233 = vpop.permute.xlu0 %232
    %v235 = vmul.f32 %v213, %v233
    %238 = vrot.lane.b32.xlu0 %v235, 96
    %v239 = vpop.permute.xlu0 %238
    %v241 = vsel %vm111, %v186, %v239
    %v243 = vsel %vm113, %v241, 0
    %245 = vmatpush.msra.mxu0 0.0
    %246 = vmatpush.msra.mxu0 0.0
    %247 = vmatpush.msra.mxu0 0.0
    %248 = vmatpush.msra.mxu0 0.0
    %249 = vmatpush.msra.mxu0 0.0
    %250 = vmatpush.msra.mxu0 0.0
    %251 = vmatpush.msra.mxu0 0.0
    %252 = vmatpush.msra.mxu0 0.0
    %253 = vmatpush.msra.mxu0 %v61
    %254 = vmatpush.msra.mxu0 %v59
    %255 = vmatpush.msra.mxu0 %v57
    %256 = vmatpush.msra.mxu0 %v55
    %257 = vmatpush.msra.mxu0 %v53
    %258 = vmatpush.msra.mxu0 %v51
    %259 = vmatpush.msra.mxu0 %v49
    %260 = vmatpush.msra.mxu0 %v47
    %261 = vmatmul.f32.gmra.mxu0 %v243
    %v262 = vpop.f32.mrf.mxu0
    %v263 = vadd.f32 0.0, %v262
    %264 = vdwg.mxu0
    %265 = vmatpush.msra.mxu0 0.0
    %266 = vmatpush.msra.mxu0 0.0
    %267 = vmatpush.msra.mxu0 0.0
    %268 = vmatpush.msra.mxu0 0.0
    %269 = vmatpush.msra.mxu0 0.0
    %270 = vmatpush.msra.mxu0 0.0
    %271 = vmatpush.msra.mxu0 0.0
    %272 = vmatpush.msra.mxu0 0.0
    %273 = vmatpush.msra.mxu0 %v62
    %274 = vmatpush.msra.mxu0 %v60
    %275 = vmatpush.msra.mxu0 %v58
    %276 = vmatpush.msra.mxu0 %v56
    %277 = vmatpush.msra.mxu0 %v54
    %278 = vmatpush.msra.mxu0 %v52
    %279 = vmatpush.msra.mxu0 %v50
    %280 = vmatpush.msra.mxu0 %v48
    %281 = vmatmul.f32.gmra.mxu0 %v243
    %v282 = vpop.f32.mrf.mxu0
    %v283 = vadd.f32 0.0, %v282
    %284 = vdwg.mxu0
    %v286 = vrot.slane %v263, 6
    %v288 = vadd.f32 %v95, %v286
    %v289 = vmul.f32 %v288, 0.5
    %v290 = vtanh.pop %v289
    %v291 = vadd.f32 %v290, 1.0
    %v292 = vmul.f32 %v291, 0.5
    %v293 = vtanh.pop %v288
    %v295 = vrot.slane %v177, 6
    %v297 = vmul.f32 %v292, %v295
    %299 = vrot.lane.b32.xlu0 %v293, 32
    %v300 = vpop.permute.xlu0 %299
    %v302 = vmul.f32 %v292, %v300
    %304 = vrot.lane.b32.xlu0 %v302, 32
    %v305 = vpop.permute.xlu0 %304
    %v307 = vadd.f32 %v297, %v305
    %v308 = vtanh.pop %v307
    %310 = vrot.lane.b32.xlu0 %v308, 32
    %v311 = vpop.permute.xlu0 %310
    %v313 = vmul.f32 %v292, %v311
    %v315 = vrot.slane %v313, 2
    %316 = vrot.lane.b32.xlu0 %v315, 64
    %v317 = vpop.permute.xlu0 %316
    %v318 = vsel %vm111, %v317, 0
    %320 = vmatpush.msra.mxu0 0.0
    %321 = vmatpush.msra.mxu0 0.0
    %322 = vmatpush.msra.mxu0 0.0
    %323 = vmatpush.msra.mxu0 0.0
    %324 = vmatpush.msra.mxu0 0.0
    %325 = vmatpush.msra.mxu0 0.0
    %326 = vmatpush.msra.mxu0 0.0
    %327 = vmatpush.msra.mxu0 0.0
    %328 = vmatpush.msra.mxu0 0.0
    %329 = vmatpush.msra.mxu0 0.0
    %330 = vmatpush.msra.mxu0 0.0
    %331 = vmatpush.msra.mxu0 0.0
    %332 = vmatpush.msra.mxu0 %v42
    %333 = vmatpush.msra.mxu0 %v41
    %334 = vmatpush.msra.mxu0 %v40
    %335 = vmatpush.msra.mxu0 %v39
    %336 = vmatmul.f32.gmra.mxu0 %v318
    %v337 = vpop.f32.mrf.mxu0
    %v338 = vadd.f32 %v283, %v337
    %339 = vdwg.mxu0
    %v340 = vadd.f32 %v338, %v46
    %v341 = vmul.f32 %v340, 0.5
    %v342 = vtanh.pop %v341
    %v343 = vadd.f32 %v342, 1.0
    %v344 = vmul.f32 %v343, 0.5
    %v345 = vtanh.pop %v340
    %v346 = vmul.f32 %v344, %v229
    %348 = vrot.lane.b32.xlu0 %v345, 32
    %v349 = vpop.permute.xlu0 %348
    %v351 = vmul.f32 %v344, %v349
    %353 = vrot.lane.b32.xlu0 %v351, 32
    %v354 = vpop.permute.xlu0 %353
    %v356 = vadd.f32 %v346, %v354
    %v357 = vtanh.pop %v356
    %359 = vrot.lane.b32.xlu0 %v357, 32
    %v360 = vpop.permute.xlu0 %359
    %v362 = vmul.f32 %v344, %v360
    %363 = vrot.lane.b32.xlu0 %v313, 64
    %v364 = vpop.permute.xlu0 %363
    %v367 = vrot.slane %v362, 6
    %368 = vrot.lane.b32.xlu0 %v367, 96
    %v369 = vpop.permute.xlu0 %368
    %v371 = vsel %vm111, %v364, %v369
    %v373 = vrot.slane %v371, 2
    %v374 = vsel %vm113, %v373, 0
    %376 = vmatpush.msra.mxu0 0.0
    %377 = vmatpush.msra.mxu0 0.0
    %378 = vmatpush.msra.mxu0 0.0
    %379 = vmatpush.msra.mxu0 0.0
    %380 = vmatpush.msra.mxu0 0.0
    %381 = vmatpush.msra.mxu0 0.0
    %382 = vmatpush.msra.mxu0 0.0
    %383 = vmatpush.msra.mxu0 0.0
    %384 = vmatpush.msra.mxu0 %v61
    %385 = vmatpush.msra.mxu0 %v59
    %386 = vmatpush.msra.mxu0 %v57
    %387 = vmatpush.msra.mxu0 %v55
    %388 = vmatpush.msra.mxu0 %v53
    %389 = vmatpush.msra.mxu0 %v51
    %390 = vmatpush.msra.mxu0 %v49
    %391 = vmatpush.msra.mxu0 %v47
    %392 = vmatmul.f32.gmra.mxu0 %v374
    %v393 = vpop.f32.mrf.mxu0
    %v394 = vadd.f32 0.0, %v393
    %395 = vdwg.mxu0
    %396 = vmatpush.msra.mxu0 0.0
    %397 = vmatpush.msra.mxu0 0.0
    %398 = vmatpush.msra.mxu0 0.0
    %399 = vmatpush.msra.mxu0 0.0
    %400 = vmatpush.msra.mxu0 0.0
    %401 = vmatpush.msra.mxu0 0.0
    %402 = vmatpush.msra.mxu0 0.0
    %403 = vmatpush.msra.mxu0 0.0
    %404 = vmatpush.msra.mxu0 %v62
    %405 = vmatpush.msra.mxu0 %v60
    %406 = vmatpush.msra.mxu0 %v58
    %407 = vmatpush.msra.mxu0 %v56
    %408 = vmatpush.msra.mxu0 %v54
    %409 = vmatpush.msra.mxu0 %v52
    %410 = vmatpush.msra.mxu0 %v50
    %411 = vmatpush.msra.mxu0 %v48
    %412 = vmatmul.f32.gmra.mxu0 %v374
    %v413 = vpop.f32.mrf.mxu0
    %v414 = vadd.f32 0.0, %v413
    %415 = vdwg.mxu0
    %v417 = vrot.slane %v394, 4
    %v419 = vadd.f32 %v95, %v417
    %v420 = vmul.f32 %v419, 0.5
    %v421 = vtanh.pop %v420
    %v422 = vadd.f32 %v421, 1.0
    %v423 = vmul.f32 %v422, 0.5
    %v424 = vtanh.pop %v419
    %v426 = vrot.slane %v307, 6
    %v428 = vmul.f32 %v423, %v426
    %430 = vrot.lane.b32.xlu0 %v424, 32
    %v431 = vpop.permute.xlu0 %430
    %v433 = vmul.f32 %v423, %v431
    %435 = vrot.lane.b32.xlu0 %v433, 32
    %v436 = vpop.permute.xlu0 %435
    %v438 = vadd.f32 %v428, %v436
    %v439 = vtanh.pop %v438
    %441 = vrot.lane.b32.xlu0 %v439, 32
    %v442 = vpop.permute.xlu0 %441
    %v444 = vmul.f32 %v423, %v442
    %v446 = vrot.slane %v444, 4
    %447 = vrot.lane.b32.xlu0 %v446, 64
    %v448 = vpop.permute.xlu0 %447
    %v449 = vsel %vm111, %v448, 0
    %451 = vmatpush.msra.mxu0 0.0
    %452 = vmatpush.msra.mxu0 0.0
    %453 = vmatpush.msra.mxu0 0.0
    %454 = vmatpush.msra.mxu0 0.0
    %455 = vmatpush.msra.mxu0 0.0
    %456 = vmatpush.msra.mxu0 0.0
    %457 = vmatpush.msra.mxu0 0.0
    %458 = vmatpush.msra.mxu0 0.0
    %459 = vmatpush.msra.mxu0 0.0
    %460 = vmatpush.msra.mxu0 0.0
    %461 = vmatpush.msra.mxu0 0.0
    %462 = vmatpush.msra.mxu0 0.0
    %463 = vmatpush.msra.mxu0 %v42
    %464 = vmatpush.msra.mxu0 %v41
    %465 = vmatpush.msra.mxu0 %v40
    %466 = vmatpush.msra.mxu0 %v39
    %467 = vmatmul.f32.gmra.mxu0 %v449
    %v468 = vpop.f32.mrf.mxu0
    %v469 = vadd.f32 %v414, %v468
    %470 = vdwg.mxu0
    %v471 = vadd.f32 %v469, %v46
    %v472 = vmul.f32 %v471, 0.5
    %v473 = vtanh.pop %v472
    %v474 = vadd.f32 %v473, 1.0
    %v475 = vmul.f32 %v474, 0.5
    %v476 = vtanh.pop %v471
    %v477 = vmul.f32 %v475, %v356
    %479 = vrot.lane.b32.xlu0 %v476, 32
    %v480 = vpop.permute.xlu0 %479
    %v482 = vmul.f32 %v475, %v480
    %484 = vrot.lane.b32.xlu0 %v482, 32
    %v485 = vpop.permute.xlu0 %484
    %v487 = vadd.f32 %v477, %v485
    %v488 = vtanh.pop %v487
    %490 = vrot.lane.b32.xlu0 %v488, 32
    %v491 = vpop.permute.xlu0 %490
    %v493 = vmul.f32 %v475, %v491
    %494 = vrot.lane.b32.xlu0 %v444, 64
    %v495 = vpop.permute.xlu0 %494
    %v498 = vrot.slane %v493, 4
    %499 = vrot.lane.b32.xlu0 %v498, 96
    %v500 = vpop.permute.xlu0 %499
    %v502 = vsel %vm111, %v495, %v500
    %v504 = vrot.slane %v502, 4
    %v505 = vsel %vm113, %v504, 0
    %507 = vmatpush.msra.mxu0 0.0
    %508 = vmatpush.msra.mxu0 0.0
    %509 = vmatpush.msra.mxu0 0.0
    %510 = vmatpush.msra.mxu0 0.0
    %511 = vmatpush.msra.mxu0 0.0
    %512 = vmatpush.msra.mxu0 0.0
    %513 = vmatpush.msra.mxu0 0.0
    %514 = vmatpush.msra.mxu0 0.0
    %515 = vmatpush.msra.mxu0 %v61
    %516 = vmatpush.msra.mxu0 %v59
    %517 = vmatpush.msra.mxu0 %v57
    %518 = vmatpush.msra.mxu0 %v55
    %519 = vmatpush.msra.mxu0 %v53
    %520 = vmatpush.msra.mxu0 %v51
    %521 = vmatpush.msra.mxu0 %v49
    %522 = vmatpush.msra.mxu0 %v47
    %523 = vmatmul.f32.gmra.mxu0 %v505
    %v524 = vpop.f32.mrf.mxu0
    %v525 = vadd.f32 0.0, %v524
    %526 = vdwg.mxu0
    %527 = vmatpush.msra.mxu0 0.0
    %528 = vmatpush.msra.mxu0 0.0
    %529 = vmatpush.msra.mxu0 0.0
    %530 = vmatpush.msra.mxu0 0.0
    %531 = vmatpush.msra.mxu0 0.0
    %532 = vmatpush.msra.mxu0 0.0
    %533 = vmatpush.msra.mxu0 0.0
    %534 = vmatpush.msra.mxu0 0.0
    %535 = vmatpush.msra.mxu0 %v62
    %536 = vmatpush.msra.mxu0 %v60
    %537 = vmatpush.msra.mxu0 %v58
    %538 = vmatpush.msra.mxu0 %v56
    %539 = vmatpush.msra.mxu0 %v54
    %540 = vmatpush.msra.mxu0 %v52
    %541 = vmatpush.msra.mxu0 %v50
    %542 = vmatpush.msra.mxu0 %v48
    %543 = vmatmul.f32.gmra.mxu0 %v505
    %v544 = vpop.f32.mrf.mxu0
    %v545 = vadd.f32 0.0, %v544
    %546 = vdwg.mxu0
    %v548 = vrot.slane %v525, 2
    %v550 = vadd.f32 %v95, %v548
    %v551 = vmul.f32 %v550, 0.5
    %v552 = vtanh.pop %v551
    %v553 = vadd.f32 %v552, 1.0
    %v554 = vmul.f32 %v553, 0.5
    %v555 = vtanh.pop %v550
    %v557 = vrot.slane %v438, 6
    %v559 = vmul.f32 %v554, %v557
    %561 = vrot.lane.b32.xlu0 %v555, 32
    %v562 = vpop.permute.xlu0 %561
    %v564 = vmul.f32 %v554, %v562
    %566 = vrot.lane.b32.xlu0 %v564, 32
    %v567 = vpop.permute.xlu0 %566
    %v569 = vadd.f32 %v559, %v567
    %v570 = vtanh.pop %v569
    %572 = vrot.lane.b32.xlu0 %v570, 32
    %v573 = vpop.permute.xlu0 %572
    %v575 = vmul.f32 %v554, %v573
    %v577 = vrot.slane %v575, 6
    %578 = vrot.lane.b32.xlu0 %v577, 64
    %v579 = vpop.permute.xlu0 %578
    %v580 = vsel %vm111, %v579, 0
    %582 = vmatpush.msra.mxu0 0.0
    %583 = vmatpush.msra.mxu0 0.0
    %584 = vmatpush.msra.mxu0 0.0
    %585 = vmatpush.msra.mxu0 0.0
    %586 = vmatpush.msra.mxu0 0.0
    %587 = vmatpush.msra.mxu0 0.0
    %588 = vmatpush.msra.mxu0 0.0
    %589 = vmatpush.msra.mxu0 0.0
    %590 = vmatpush.msra.mxu0 0.0
    %591 = vmatpush.msra.mxu0 0.0
    %592 = vmatpush.msra.mxu0 0.0
    %593 = vmatpush.msra.mxu0 0.0
    %594 = vmatpush.msra.mxu0 %v42
    %595 = vmatpush.msra.mxu0 %v41
    %596 = vmatpush.msra.mxu0 %v40
    %597 = vmatpush.msra.mxu0 %v39
    %598 = vmatmul.f32.gmra.mxu0 %v580
    %v599 = vpop.f32.mrf.mxu0
    %v600 = vadd.f32 %v545, %v599
    %601 = vdwg.mxu0
    %v602 = vadd.f32 %v600, %v46
    %v603 = vmul.f32 %v602, 0.5
    %v604 = vtanh.pop %v603
    %v605 = vadd.f32 %v604, 1.0
    %v606 = vmul.f32 %v605, 0.5
    %v607 = vtanh.pop %v602
    %v608 = vmul.f32 %v606, %v487
    %610 = vrot.lane.b32.xlu0 %v607, 32
    %v611 = vpop.permute.xlu0 %610
    %v613 = vmul.f32 %v606, %v611
    %615 = vrot.lane.b32.xlu0 %v613, 32
    %v616 = vpop.permute.xlu0 %615
    %v618 = vadd.f32 %v608, %v616
    %v619 = vtanh.pop %v618
    %621 = vrot.lane.b32.xlu0 %v619, 32
    %v622 = vpop.permute.xlu0 %621
    %v624 = vmul.f32 %v606, %v622
    %625 = vrot.lane.b32.xlu0 %v575, 64
    %v626 = vpop.permute.xlu0 %625
    %v629 = vrot.slane %v624, 2
    %630 = vrot.lane.b32.xlu0 %v629, 96
    %v631 = vpop.permute.xlu0 %630
    %v633 = vsel %vm111, %v626, %v631
    %v635 = vrot.slane %v633, 6
    %v636 = vsel %vm113, %v635, 0
    %638 = vmatpush.msra.mxu0 0.0
    %639 = vmatpush.msra.mxu0 0.0
    %640 = vmatpush.msra.mxu0 0.0
    %641 = vmatpush.msra.mxu0 0.0
    %642 = vmatpush.msra.mxu0 0.0
    %643 = vmatpush.msra.mxu0 0.0
    %644 = vmatpush.msra.mxu0 0.0
    %645 = vmatpush.msra.mxu0 0.0
    %646 = vmatpush.msra.mxu0 %v61
    %647 = vmatpush.msra.mxu0 %v59
    %648 = vmatpush.msra.mxu0 %v57
    %649 = vmatpush.msra.mxu0 %v55
    %650 = vmatpush.msra.mxu0 %v53
    %651 = vmatpush.msra.mxu0 %v51
    %652 = vmatpush.msra.mxu0 %v49
    %653 = vmatpush.msra.mxu0 %v47
    %654 = vmatmul.f32.gmra.mxu0 %v636
    %v655 = vpop.f32.mrf.mxu0
    %v656 = vadd.f32 0.0, %v655
    %657 = vdwg.mxu0
    %658 = vmatpush.msra.mxu0 0.0
    %659 = vmatpush.msra.mxu0 0.0
    %660 = vmatpush.msra.mxu0 0.0
    %661 = vmatpush.msra.mxu0 0.0
    %662 = vmatpush.msra.mxu0 0.0
    %663 = vmatpush.msra.mxu0 0.0
    %664 = vmatpush.msra.mxu0 0.0
    %665 = vmatpush.msra.mxu0 0.0
    %666 = vmatpush.msra.mxu0 %v62
    %667 = vmatpush.msra.mxu0 %v60
    %668 = vmatpush.msra.mxu0 %v58
    %669 = vmatpush.msra.mxu0 %v56
    %670 = vmatpush.msra.mxu0 %v54
    %671 = vmatpush.msra.mxu0 %v52
    %672 = vmatpush.msra.mxu0 %v50
    %673 = vmatpush.msra.mxu0 %v48
    %674 = vmatmul.f32.gmra.mxu0 %v636
    %v675 = vpop.f32.mrf.mxu0
    %v676 = vadd.f32 0.0, %v675
    %677 = vdwg.mxu0
    %v678 = vadd.f32 %v98, %v656
    %v679 = vmul.f32 %v678, 0.5
    %v680 = vtanh.pop %v679
    %v681 = vadd.f32 %v680, 1.0
    %v682 = vmul.f32 %v681, 0.5
    %v683 = vtanh.pop %v678
    %v685 = vrot.slane %v569, 6
    %v687 = vmul.f32 %v682, %v685
    %689 = vrot.lane.b32.xlu0 %v683, 32
    %v690 = vpop.permute.xlu0 %689
    %v692 = vmul.f32 %v682, %v690
    %694 = vrot.lane.b32.xlu0 %v692, 32
    %v695 = vpop.permute.xlu0 %694
    %v697 = vadd.f32 %v687, %v695
    %v698 = vtanh.pop %v697
    %700 = vrot.lane.b32.xlu0 %v698, 32
    %v701 = vpop.permute.xlu0 %700
    %v703 = vmul.f32 %v682, %v701
    %705 = vrot.lane.b32.xlu0 %v703, 64
    %v706 = vpop.permute.xlu0 %705
    %v707 = vsel %vm111, %v706, 0
    %709 = vmatpush.msra.mxu0 0.0
    %710 = vmatpush.msra.mxu0 0.0
    %711 = vmatpush.msra.mxu0 0.0
    %712 = vmatpush.msra.mxu0 0.0
    %713 = vmatpush.msra.mxu0 0.0
    %714 = vmatpush.msra.mxu0 0.0
    %715 = vmatpush.msra.mxu0 0.0
    %716 = vmatpush.msra.mxu0 0.0
    %717 = vmatpush.msra.mxu0 0.0
    %718 = vmatpush.msra.mxu0 0.0
    %719 = vmatpush.msra.mxu0 0.0
    %720 = vmatpush.msra.mxu0 0.0
    %721 = vmatpush.msra.mxu0 %v42
    %722 = vmatpush.msra.mxu0 %v41
    %723 = vmatpush.msra.mxu0 %v40
    %724 = vmatpush.msra.mxu0 %v39
    %725 = vmatmul.f32.gmra.mxu0 %v707
    %v726 = vpop.f32.mrf.mxu0
    %v727 = vadd.f32 %v676, %v726
    %728 = vdwg.mxu0
    %v729 = vadd.f32 %v727, %v46
    %v730 = vmul.f32 %v729, 0.5
    %v731 = vtanh.pop %v730
    %v732 = vadd.f32 %v731, 1.0
    %v733 = vmul.f32 %v732, 0.5
    %v734 = vtanh.pop %v729
    %v735 = vmul.f32 %v733, %v618
    %737 = vrot.lane.b32.xlu0 %v734, 32
    %v738 = vpop.permute.xlu0 %737
    %v740 = vmul.f32 %v733, %v738
    %742 = vrot.lane.b32.xlu0 %v740, 32
    %v743 = vpop.permute.xlu0 %742
    %v745 = vadd.f32 %v735, %v743
    %v746 = vtanh.pop %v745
    %748 = vrot.lane.b32.xlu0 %v746, 32
    %v749 = vpop.permute.xlu0 %748
    %v751 = vmul.f32 %v733, %v749
    %754 = vrot.lane.b32.xlu0 %v751, 96
    %v755 = vpop.permute.xlu0 %754
    %v757 = vsel %vm111, %v706, %v755
    %v759 = vsel %vm113, %v757, 0
    %761 = vmatpush.msra.mxu0 0.0
    %762 = vmatpush.msra.mxu0 0.0
    %763 = vmatpush.msra.mxu0 0.0
    %764 = vmatpush.msra.mxu0 0.0
    %765 = vmatpush.msra.mxu0 0.0
    %766 = vmatpush.msra.mxu0 0.0
    %767 = vmatpush.msra.mxu0 0.0
    %768 = vmatpush.msra.mxu0 0.0
    %769 = vmatpush.msra.mxu0 %v61
    %770 = vmatpush.msra.mxu0 %v59
    %771 = vmatpush.msra.mxu0 %v57
    %772 = vmatpush.msra.mxu0 %v55
    %773 = vmatpush.msra.mxu0 %v53
    %774 = vmatpush.msra.mxu0 %v51
    %775 = vmatpush.msra.mxu0 %v49
    %776 = vmatpush.msra.mxu0 %v47
    %777 = vmatmul.f32.gmra.mxu0 %v759
    %v778 = vpop.f32.mrf.mxu0
    %v779 = vadd.f32 0.0, %v778
    %780 = vdwg.mxu0
    %781 = vmatpush.msra.mxu0 0.0
    %782 = vmatpush.msra.mxu0 0.0
    %783 = vmatpush.msra.mxu0 0.0
    %784 = vmatpush.msra.mxu0 0.0
    %785 = vmatpush.msra.mxu0 0.0
    %786 = vmatpush.msra.mxu0 0.0
    %787 = vmatpush.msra.mxu0 0.0
    %788 = vmatpush.msra.mxu0 0.0
    %789 = vmatpush.msra.mxu0 %v62
    %790 = vmatpush.msra.mxu0 %v60
    %791 = vmatpush.msra.mxu0 %v58
    %792 = vmatpush.msra.mxu0 %v56
    %793 = vmatpush.msra.mxu0 %v54
    %794 = vmatpush.msra.mxu0 %v52
    %795 = vmatpush.msra.mxu0 %v50
    %796 = vmatpush.msra.mxu0 %v48
    %797 = vmatmul.f32.gmra.mxu0 %v759
    %v798 = vpop.f32.mrf.mxu0
    %v799 = vadd.f32 0.0, %v798
    %800 = vdwg.mxu0
    %v802 = vrot.slane %v779, 6
    %v804 = vadd.f32 %v98, %v802
    %v805 = vmul.f32 %v804, 0.5
    %v806 = vtanh.pop %v805
    %v807 = vadd.f32 %v806, 1.0
    %v808 = vmul.f32 %v807, 0.5
    %v809 = vtanh.pop %v804
    %v811 = vrot.slane %v697, 6
    %v813 = vmul.f32 %v808, %v811
    %815 = vrot.lane.b32.xlu0 %v809, 32
    %v816 = vpop.permute.xlu0 %815
    %v818 = vmul.f32 %v808, %v816
    %820 = vrot.lane.b32.xlu0 %v818, 32
    %v821 = vpop.permute.xlu0 %820
    %v823 = vadd.f32 %v813, %v821
    %v824 = vtanh.pop %v823
    %826 = vrot.lane.b32.xlu0 %v824, 32
    %v827 = vpop.permute.xlu0 %826
    %v829 = vmul.f32 %v808, %v827
    %v831 = vrot.slane %v829, 2
    %832 = vrot.lane.b32.xlu0 %v831, 64
    %v833 = vpop.permute.xlu0 %832
    %v834 = vsel %vm111, %v833, 0
    %836 = vmatpush.msra.mxu0 0.0
    %837 = vmatpush.msra.mxu0 0.0
    %838 = vmatpush.msra.mxu0 0.0
    %839 = vmatpush.msra.mxu0 0.0
    %840 = vmatpush.msra.mxu0 0.0
    %841 = vmatpush.msra.mxu0 0.0
    %842 = vmatpush.msra.mxu0 0.0
    %843 = vmatpush.msra.mxu0 0.0
    %844 = vmatpush.msra.mxu0 0.0
    %845 = vmatpush.msra.mxu0 0.0
    %846 = vmatpush.msra.mxu0 0.0
    %847 = vmatpush.msra.mxu0 0.0
    %848 = vmatpush.msra.mxu0 %v42
    %849 = vmatpush.msra.mxu0 %v41
    %850 = vmatpush.msra.mxu0 %v40
    %851 = vmatpush.msra.mxu0 %v39
    %852 = vmatmul.f32.gmra.mxu0 %v834
    %v853 = vpop.f32.mrf.mxu0
    %v854 = vadd.f32 %v799, %v853
    %855 = vdwg.mxu0
    %v856 = vadd.f32 %v854, %v46
    %v857 = vmul.f32 %v856, 0.5
    %v858 = vtanh.pop %v857
    %v859 = vadd.f32 %v858, 1.0
    %v860 = vmul.f32 %v859, 0.5
    %v861 = vtanh.pop %v856
    %v862 = vmul.f32 %v860, %v745
    %864 = vrot.lane.b32.xlu0 %v861, 32
    %v865 = vpop.permute.xlu0 %864
    %v867 = vmul.f32 %v860, %v865
    %869 = vrot.lane.b32.xlu0 %v867, 32
    %v870 = vpop.permute.xlu0 %869
    %v872 = vadd.f32 %v862, %v870
    %v873 = vtanh.pop %v872
    %875 = vrot.lane.b32.xlu0 %v873, 32
    %v876 = vpop.permute.xlu0 %875
    %v878 = vmul.f32 %v860, %v876
    %879 = vrot.lane.b32.xlu0 %v829, 64
    %v880 = vpop.permute.xlu0 %879
    %v883 = vrot.slane %v878, 6
    %884 = vrot.lane.b32.xlu0 %v883, 96
    %v885 = vpop.permute.xlu0 %884
    %v887 = vsel %vm111, %v880, %v885
    %v889 = vrot.slane %v887, 2
    %v890 = vsel %vm113, %v889, 0
    %892 = vmatpush.msra.mxu0 0.0
    %893 = vmatpush.msra.mxu0 0.0
    %894 = vmatpush.msra.mxu0 0.0
    %895 = vmatpush.msra.mxu0 0.0
    %896 = vmatpush.msra.mxu0 0.0
    %897 = vmatpush.msra.mxu0 0.0
    %898 = vmatpush.msra.mxu0 0.0
    %899 = vmatpush.msra.mxu0 0.0
    %900 = vmatpush.msra.mxu0 %v61
    %901 = vmatpush.msra.mxu0 %v59
    %902 = vmatpush.msra.mxu0 %v57
    %903 = vmatpush.msra.mxu0 %v55
    %904 = vmatpush.msra.mxu0 %v53
    %905 = vmatpush.msra.mxu0 %v51
    %906 = vmatpush.msra.mxu0 %v49
    %907 = vmatpush.msra.mxu0 %v47
    %908 = vmatmul.f32.gmra.mxu0 %v890
    %v909 = vpop.f32.mrf.mxu0
    %v910 = vadd.f32 0.0, %v909
    %911 = vdwg.mxu0
    %912 = vmatpush.msra.mxu0 0.0
    %913 = vmatpush.msra.mxu0 0.0
    %914 = vmatpush.msra.mxu0 0.0
    %915 = vmatpush.msra.mxu0 0.0
    %916 = vmatpush.msra.mxu0 0.0
    %917 = vmatpush.msra.mxu0 0.0
    %918 = vmatpush.msra.mxu0 0.0
    %919 = vmatpush.msra.mxu0 0.0
    %920 = vmatpush.msra.mxu0 %v62
    %921 = vmatpush.msra.mxu0 %v60
    %922 = vmatpush.msra.mxu0 %v58
    %923 = vmatpush.msra.mxu0 %v56
    %924 = vmatpush.msra.mxu0 %v54
    %925 = vmatpush.msra.mxu0 %v52
    %926 = vmatpush.msra.mxu0 %v50
    %927 = vmatpush.msra.mxu0 %v48
    %928 = vmatmul.f32.gmra.mxu0 %v890
    %v929 = vpop.f32.mrf.mxu0
    %v930 = vadd.f32 0.0, %v929
    %931 = vdwg.mxu0
    %v933 = vrot.slane %v910, 4
    %v935 = vadd.f32 %v98, %v933
    %v936 = vmul.f32 %v935, 0.5
    %v937 = vtanh.pop %v936
    %v938 = vadd.f32 %v937, 1.0
    %v939 = vmul.f32 %v938, 0.5
    %v940 = vtanh.pop %v935
    %v942 = vrot.slane %v823, 6
    %v944 = vmul.f32 %v939, %v942
    %946 = vrot.lane.b32.xlu0 %v940, 32
    %v947 = vpop.permute.xlu0 %946
    %v949 = vmul.f32 %v939, %v947
    %951 = vrot.lane.b32.xlu0 %v949, 32
    %v952 = vpop.permute.xlu0 %951
    %v954 = vadd.f32 %v944, %v952
    %v955 = vtanh.pop %v954
    %957 = vrot.lane.b32.xlu0 %v955, 32
    %v958 = vpop.permute.xlu0 %957
    %v960 = vmul.f32 %v939, %v958
    %v962 = vrot.slane %v960, 4
    %963 = vrot.lane.b32.xlu0 %v962, 64
    %v964 = vpop.permute.xlu0 %963
    %v965 = vsel %vm111, %v964, 0
    %967 = vmatpush.msra.mxu0 0.0
    %968 = vmatpush.msra.mxu0 0.0
    %969 = vmatpush.msra.mxu0 0.0
    %970 = vmatpush.msra.mxu0 0.0
    %971 = vmatpush.msra.mxu0 0.0
    %972 = vmatpush.msra.mxu0 0.0
    %973 = vmatpush.msra.mxu0 0.0
    %974 = vmatpush.msra.mxu0 0.0
    %975 = vmatpush.msra.mxu0 0.0
    %976 = vmatpush.msra.mxu0 0.0
    %977 = vmatpush.msra.mxu0 0.0
    %978 = vmatpush.msra.mxu0 0.0
    %979 = vmatpush.msra.mxu0 %v42
    %980 = vmatpush.msra.mxu0 %v41
    %981 = vmatpush.msra.mxu0 %v40
    %982 = vmatpush.msra.mxu0 %v39
    %983 = vmatmul.f32.gmra.mxu0 %v965
    %v984 = vpop.f32.mrf.mxu0
    %v985 = vadd.f32 %v930, %v984
    %986 = vdwg.mxu0
    %v987 = vadd.f32 %v985, %v46
    %v988 = vmul.f32 %v987, 0.5
    %v989 = vtanh.pop %v988
    %v990 = vadd.f32 %v989, 1.0
    %v991 = vmul.f32 %v990, 0.5
    %v992 = vtanh.pop %v987
    %v993 = vmul.f32 %v991, %v872
    %995 = vrot.lane.b32.xlu0 %v992, 32
    %v996 = vpop.permute.xlu0 %995
    %v998 = vmul.f32 %v991, %v996
    %1000 = vrot.lane.b32.xlu0 %v998, 32
    %v1001 = vpop.permute.xlu0 %1000
    %v1003 = vadd.f32 %v993, %v1001
    %v1004 = vtanh.pop %v1003
    %1006 = vrot.lane.b32.xlu0 %v1004, 32
    %v1007 = vpop.permute.xlu0 %1006
    %v1009 = vmul.f32 %v991, %v1007
    %1010 = vrot.lane.b32.xlu0 %v960, 64
    %v1011 = vpop.permute.xlu0 %1010
    %v1014 = vrot.slane %v1009, 4
    %1015 = vrot.lane.b32.xlu0 %v1014, 96
    %v1016 = vpop.permute.xlu0 %1015
    %v1018 = vsel %vm111, %v1011, %v1016
    %v1020 = vrot.slane %v1018, 4
    %v1021 = vsel %vm113, %v1020, 0
    %1023 = vmatpush.msra.mxu0 0.0
    %1024 = vmatpush.msra.mxu0 0.0
    %1025 = vmatpush.msra.mxu0 0.0
    %1026 = vmatpush.msra.mxu0 0.0
    %1027 = vmatpush.msra.mxu0 0.0
    %1028 = vmatpush.msra.mxu0 0.0
    %1029 = vmatpush.msra.mxu0 0.0
    %1030 = vmatpush.msra.mxu0 0.0
    %1031 = vmatpush.msra.mxu0 %v61
    %1032 = vmatpush.msra.mxu0 %v59
    %1033 = vmatpush.msra.mxu0 %v57
    %1034 = vmatpush.msra.mxu0 %v55
    %1035 = vmatpush.msra.mxu0 %v53
    %1036 = vmatpush.msra.mxu0 %v51
    %1037 = vmatpush.msra.mxu0 %v49
    %1038 = vmatpush.msra.mxu0 %v47
    %1039 = vmatmul.f32.gmra.mxu0 %v1021
    %v1040 = vpop.f32.mrf.mxu0
    %v1041 = vadd.f32 0.0, %v1040
    %1042 = vdwg.mxu0
    %1043 = vmatpush.msra.mxu0 0.0
    %1044 = vmatpush.msra.mxu0 0.0
    %1045 = vmatpush.msra.mxu0 0.0
    %1046 = vmatpush.msra.mxu0 0.0
    %1047 = vmatpush.msra.mxu0 0.0
    %1048 = vmatpush.msra.mxu0 0.0
    %1049 = vmatpush.msra.mxu0 0.0
    %1050 = vmatpush.msra.mxu0 0.0
    %1051 = vmatpush.msra.mxu0 %v62
    %1052 = vmatpush.msra.mxu0 %v60
    %1053 = vmatpush.msra.mxu0 %v58
    %1054 = vmatpush.msra.mxu0 %v56
    %1055 = vmatpush.msra.mxu0 %v54
    %1056 = vmatpush.msra.mxu0 %v52
    %1057 = vmatpush.msra.mxu0 %v50
    %1058 = vmatpush.msra.mxu0 %v48
    %1059 = vmatmul.f32.gmra.mxu0 %v1021
    %v1060 = vpop.f32.mrf.mxu0
    %v1061 = vadd.f32 0.0, %v1060
    %1062 = vdwg.mxu0
    %v1064 = vrot.slane %v1041, 2
    %v1066 = vadd.f32 %v98, %v1064
    %v1067 = vmul.f32 %v1066, 0.5
    %v1068 = vtanh.pop %v1067
    %v1069 = vadd.f32 %v1068, 1.0
    %v1070 = vmul.f32 %v1069, 0.5
    %v1071 = vtanh.pop %v1066
    %v1073 = vrot.slane %v954, 6
    %v1075 = vmul.f32 %v1070, %v1073
    %1077 = vrot.lane.b32.xlu0 %v1071, 32
    %v1078 = vpop.permute.xlu0 %1077
    %v1080 = vmul.f32 %v1070, %v1078
    %1082 = vrot.lane.b32.xlu0 %v1080, 32
    %v1083 = vpop.permute.xlu0 %1082
    %v1085 = vadd.f32 %v1075, %v1083
    %v1086 = vtanh.pop %v1085
    %1088 = vrot.lane.b32.xlu0 %v1086, 32
    %v1089 = vpop.permute.xlu0 %1088
    %v1091 = vmul.f32 %v1070, %v1089
    %v1093 = vrot.slane %v1091, 6
    %1094 = vrot.lane.b32.xlu0 %v1093, 64
    %v1095 = vpop.permute.xlu0 %1094
    %v1096 = vsel %vm111, %v1095, 0
    %1098 = vmatpush.msra.mxu0 0.0
    %1099 = vmatpush.msra.mxu0 0.0
    %1100 = vmatpush.msra.mxu0 0.0
    %1101 = vmatpush.msra.mxu0 0.0
    %1102 = vmatpush.msra.mxu0 0.0
    %1103 = vmatpush.msra.mxu0 0.0
    %1104 = vmatpush.msra.mxu0 0.0
    %1105 = vmatpush.msra.mxu0 0.0
    %1106 = vmatpush.msra.mxu0 0.0
    %1107 = vmatpush.msra.mxu0 0.0
    %1108 = vmatpush.msra.mxu0 0.0
    %1109 = vmatpush.msra.mxu0 0.0
    %1110 = vmatpush.msra.mxu0 %v42
    %1111 = vmatpush.msra.mxu0 %v41
    %1112 = vmatpush.msra.mxu0 %v40
    %1113 = vmatpush.msra.mxu0 %v39
    %1114 = vmatmul.f32.gmra.mxu0 %v1096
    %v1115 = vpop.f32.mrf.mxu0
    %v1116 = vadd.f32 %v1061, %v1115
    %1117 = vdwg.mxu0
    %v1118 = vadd.f32 %v1116, %v46
    %v1119 = vmul.f32 %v1118, 0.5
    %v1120 = vtanh.pop %v1119
    %v1121 = vadd.f32 %v1120, 1.0
    %v1122 = vmul.f32 %v1121, 0.5
    %v1123 = vtanh.pop %v1118
    %v1124 = vmul.f32 %v1122, %v1003
    %1126 = vrot.lane.b32.xlu0 %v1123, 32
    %v1127 = vpop.permute.xlu0 %1126
    %v1129 = vmul.f32 %v1122, %v1127
    %1131 = vrot.lane.b32.xlu0 %v1129, 32
    %v1132 = vpop.permute.xlu0 %1131
    %v1134 = vadd.f32 %v1124, %v1132
    %v1135 = vtanh.pop %v1134
    %1137 = vrot.lane.b32.xlu0 %v1135, 32
    %v1138 = vpop.permute.xlu0 %1137
    %v1140 = vmul.f32 %v1122, %v1138
    %v1141 = vld [vmem:[%s3] sm:$0xff]
    %v1142 = vld [vmem:[%s3 + $0x8] sm:$0xff]
    %v1143 = vld [vmem:[%s3 + $0x10] sm:$0xff]
    %v1144 = vld [vmem:[%s3 + $0x18] sm:$0xff]
    %v1145 = vld [vmem:[%s3 + $0x20] sm:$0x1]
    %v1146 = vperm.slane %v1145, 0
    %1148 = vrot.lane.b32.xlu0 %v1140, 64
    %v1149 = vpop.permute.xlu0 %1148
    %v1150 = vsel %vm111, %v1149, 0
    %1152 = vmatpush.msra.mxu0 0.0
    %1153 = vmatpush.msra.mxu0 0.0
    %1154 = vmatpush.msra.mxu0 0.0
    %1155 = vmatpush.msra.mxu0 0.0
    %1156 = vmatpush.msra.mxu0 0.0
    %1157 = vmatpush.msra.mxu0 0.0
    %1158 = vmatpush.msra.mxu0 0.0
    %1159 = vmatpush.msra.mxu0 0.0
    %1160 = vmatpush.msra.mxu0 0.0
    %1161 = vmatpush.msra.mxu0 0.0
    %1162 = vmatpush.msra.mxu0 0.0
    %1163 = vmatpush.msra.mxu0 0.0
    %1164 = vmatpush.msra.mxu0 %v1144
    %1165 = vmatpush.msra.mxu0 %v1143
    %1166 = vmatpush.msra.mxu0 %v1142
    %1167 = vmatpush.msra.mxu0 %v1141
    %1168 = vmatmul.f32.gmra.mxu0 %v1150
    %v1169 = vpop.f32.mrf.mxu0
    %v1170 = vadd.f32 %v1146, %v1169
    %1171 = vdwg.mxu0
    %vm1172 = vcmask 25600
    %1173 = vst.msk [vmem:[#allocation5] sm:$0x3] %vm1172, %v1170
    %1174 = vrot.lane.b32.xlu0 %v1091, 64
    %v1175 = vpop.permute.xlu0 %1174
    %vm1177 = vcmask 261126
    %1178 = vst.msk [vmem:[%s6 - $0x6] sm:$0xc0] %vm1177, %v1175
    %1180 = vrot.lane.b32.xlu0 %v1085, 96
    %v1181 = vpop.permute.xlu0 %1180
    %s1183 = scalar_lea.vmem %s6, 4
    %1184 = vst.msk [vmem:[%s1183 - $0x6] sm:$0xc0] %vm1177, %v1181
    %s1186 = scalar_lea.vmem %s6, 2
    %vm1187 = vcmask 254976
    %1188 = vst.msk [vmem:[%s1186] sm:$0x3] %vm1187, %v1149
    %1190 = vrot.lane.b32.xlu0 %v1134, 96
    %v1191 = vpop.permute.xlu0 %1190
    %s1193 = scalar_lea.vmem %s6, 6
    %1194 = vst.msk [vmem:[%s1193] sm:$0x3] %vm1187, %v1191
    // Predicated region
    $region26: #{_lstm_fused_forward.1} parent=1 // pred_check
      _
    $region27: #{_lstm_fused_forward.1} parent=1 // pred_check_branch
      %1196 = sbr.rel (0) target = $region29
    $region28: #{_lstm_fused_forward.1} parent=1 // pred_region
      %1198 = vsyncadd [#allocation4], 0
      %s1200 = sshll.u32 [#allocation5], 4
      %s1201 = int_to_ptr.vmem [resolvable:$true] %s1200
      %s1202 = sshll.u32 %s5, 4
      %s1203 = int_to_ptr.hbm [resolvable:$true] %s1202
      %1205 = dma.vmem_to_hbm [thread:$0]  %s1201, 32, %s1203, [#allocation4]
    $region29: #{_lstm_fused_forward.1} parent=1 // pred_fallthru
      _
    // Predicated region
    $region30: #{_lstm_fused_forward.1} parent=1 // pred_check
      _
    $region31: #{_lstm_fused_forward.1} parent=1 // pred_check_branch
      %1207 = sbr.rel (0) target = $region33
    $region32: #{_lstm_fused_forward.1} parent=1 // pred_region
      _
    $region33: #{_lstm_fused_forward.1} parent=1 // pred_fallthru
      _
    // Predicated region
    $region34: #{_lstm_fused_forward.1} parent=1 // pred_check
      _
    $region35: #{_lstm_fused_forward.1} parent=1 // pred_check_branch
      %1209 = sbr.rel (0) target = $region37
    $region36: #{_lstm_fused_forward.1} parent=1 // pred_region
      %1211 = dma.done [#allocation4], 32
    $region37: #{_lstm_fused_forward.1} parent=1 // pred_fallthru
      _
    // Predicated region
    $region38: #{_lstm_fused_forward.1} parent=1 // pred_check
      _
    $region39: #{_lstm_fused_forward.1} parent=1 // pred_check_branch
      %1213 = sbr.rel (0) target = $region41
    $region40: #{_lstm_fused_forward.1} parent=1 // pred_region
      _
    $region41: #{_lstm_fused_forward.1} parent=1 // pred_fallthru
      _
    %1214 = vsyncpa [#allocation3], 1
    %1215 = vsyncpa [#allocation4], 1

</llo_original>
